<compile_context>
chip_gen: v5e
topology: v5e:2x2
jax: 0.10.0
libtpu: 0.0.40
codegen_flags: <defaults>
</compile_context>

<pallas_src>
import functools

import jax
import jax.numpy as jnp
from jax import lax
from jax.experimental import pallas as pl
from jax.experimental.pallas import tpu as pltpu


# ----------------------------- Pallas kernels ------------------------------

def conv1_kernel(x_ref, cbias_ref, w_ref, y_ref, psum_ref, psq_ref, *,
                 kh, kw, cin, oc, ho, wo):
    """Per-sample VALID 4x4 conv (im2col done in-kernel via static slices of
    the NHWC VMEM tile) plus the folded condition/bias term.  Also emits
    per-sample BatchNorm partials (sum, sum-of-squares over spatial dims) so
    batch statistics can be combined across the parallel batch grid."""
    x = x_ref[...]                                 # (H, W, cin), channels on lanes
    w = w_ref[...]                                 # (kh*kw*cin, 1, oc)
    acc = jnp.zeros((ho, wo, oc), jnp.float32)
    for ki in range(kh):
        for kj in range(kw):
            patch = x[ki:ki + ho, kj:kj + wo, :]   # (ho, wo, cin) shifted window
            for ci in range(cin):
                r = (ki * kw + kj) * cin + ci
                # (ho, wo, 1) * (1, 1, oc) -> (ho, wo, oc)   VPU broadcast-FMA
                acc = acc + patch[:, :, ci:ci + 1] * w[r:r + 1, :, :]
    y = acc + cbias_ref[...]                       # (1, 1, oc): b1 + folded cond term
    y_ref[...] = y
    ps = jnp.sum(jnp.sum(y, axis=0, keepdims=True), axis=1, keepdims=True)
    pq = jnp.sum(jnp.sum(y * y, axis=0, keepdims=True), axis=1, keepdims=True)
    psum_ref[...] = ps                             # (1, 1, oc)
    psq_ref[...] = pq                              # (1, 1, oc)


def bn_lrelu_conv2_kernel(h_ref, scale_ref, shift_ref, w_ref, b_ref, o_ref, *,
                          kh, kw, oc, ho, wo):
    """Fused BatchNorm apply (precomputed scale/shift) + LeakyReLU(0.2) +
    second VALID 4x4 conv (out_channels = 1), computed as VPU multiply +
    lane reduce over the channel (lane) axis — no 1-wide MXU output."""
    y = h_ref[...] * scale_ref[...] + shift_ref[...]      # (H1, W1, oc)
    y = jnp.where(y > 0, y, 0.2 * y)                      # LeakyReLU(0.2)
    w = w_ref[...]                                        # (kh*kw, 1, oc)
    acc = jnp.zeros((ho, wo), jnp.float32)
    for ki in range(kh):
        for kj in range(kw):
            s = y[ki:ki + ho, kj:kj + wo, :]              # (ho, wo, oc)
            r = ki * kw + kj
            acc = acc + jnp.sum(s * w[r:r + 1, :, :], axis=-1)   # lane reduce
    o_ref[...] = acc + b_ref[...]                         # (ho, wo) + (1, 1)


# ------------------------------- JAX glue -----------------------------------

def init_params(key, in_chans, condition_dim, out_chans):
    k1, k2, k3, k4 = jax.random.split(key, 4)
    cin = in_chans + condition_dim
    return {
        "w1": 0.1 * jax.random.normal(k1, (out_chans, cin, 4, 4), jnp.float32),
        "b1": 0.1 * jax.random.normal(k2, (out_chans,), jnp.float32),
        "gamma": jnp.ones((out_chans,), jnp.float32),
        "beta": jnp.zeros((out_chans,), jnp.float32),
        "w2": 0.1 * jax.random.normal(k3, (1, out_chans, 4, 4), jnp.float32),
        "b2": 0.1 * jax.random.normal(k4, (1,), jnp.float32),
    }


@functools.partial(jax.jit, static_argnames=("in_chans", "condition_dim", "out_chans"))
def cond_discriminator_forward(x, c, params, *, in_chans, condition_dim, out_chans):
    """x: [N, in_chans, H, W] (NCHW), c: [N, condition_dim].
    Returns [N, 1, H-6, W-6]; matches the PyTorch module in training mode
    (batch-statistics BatchNorm, eps=1e-5)."""
    del condition_dim  # implied by c.shape[-1]; kept for the public signature
    N, _, H, W = x.shape
    OC = out_chans
    KH = KW = 4
    H1, W1 = H - KH + 1, W - KW + 1
    H2, W2 = H1 - KH + 1, W1 - KW + 1

    # Single layout change at the boundary: NCHW -> NHWC (channels on lanes).
    x_nhwc = jnp.transpose(x, (0, 2, 3, 1))                    # (N, H, W, in)

    # ---- fold the condition channels --------------------------------------
    # VALID stride-1 conv of a spatially-constant map == per-sample bias.
    w1 = params["w1"]                                          # (OC, in+cond, 4, 4)
    w1_x = jnp.transpose(w1[:, :in_chans], (2, 3, 1, 0))       # (4, 4, in, OC)
    w1_x = w1_x.reshape(KH * KW * in_chans, 1, OC)             # row = (ki,kj,c)
    w1_c = jnp.sum(w1[:, in_chans:], axis=(2, 3))              # (OC, cond)
    cond_bias = (c @ w1_c.T + params["b1"]).reshape(N, 1, 1, OC)

    # ---- kernel 1: conv1 (+ cond/bias) + BN partial stats ------------------
    k1 = functools.partial(conv1_kernel, kh=KH, kw=KW, cin=in_chans, oc=OC,
                           ho=H1, wo=W1)
    y1, psum, psq = pl.pallas_call(
        k1,
        grid=(N,),
        in_specs=[
            pl.BlockSpec((None, H, W, in_chans), lambda n: (n, 0, 0, 0)),
            pl.BlockSpec((None, 1, 1, OC), lambda n: (n, 0, 0, 0)),
            pl.BlockSpec((KH * KW * in_chans, 1, OC), lambda n: (0, 0, 0)),
        ],
        out_specs=[
            pl.BlockSpec((None, H1, W1, OC), lambda n: (n, 0, 0, 0)),
            pl.BlockSpec((None, 1, 1, OC), lambda n: (n, 0, 0, 0)),
            pl.BlockSpec((None, 1, 1, OC), lambda n: (n, 0, 0, 0)),
        ],
        out_shape=[
            jax.ShapeDtypeStruct((N, H1, W1, OC), jnp.float32),
            jax.ShapeDtypeStruct((N, 1, 1, OC), jnp.float32),
            jax.ShapeDtypeStruct((N, 1, 1, OC), jnp.float32),
        ],
        compiler_params=pltpu.CompilerParams(
            dimension_semantics=("parallel",)),
    )(x_nhwc, cond_bias, w1_x)

    # ---- combine BN partials into per-channel scale/shift (tiny, in XLA) ---
    cnt = jnp.float32(N * H1 * W1)
    mean = jnp.sum(psum, axis=0)[0, 0] / cnt                   # (OC,)
    var = jnp.sum(psq, axis=0)[0, 0] / cnt - mean * mean       # biased (train BN)
    scale = params["gamma"] * lax.rsqrt(var + 1e-5)
    shift = params["beta"] - mean * scale

    # ---- kernel 2: BN apply + LeakyReLU + conv2 (OC -> 1) -------------------
    w2 = jnp.transpose(params["w2"][0], (1, 2, 0)).reshape(KH * KW, 1, OC)
    k2 = functools.partial(bn_lrelu_conv2_kernel, kh=KH, kw=KW, oc=OC,
                           ho=H2, wo=W2)
    out = pl.pallas_call(
        k2,
        grid=(N,),
        in_specs=[
            pl.BlockSpec((None, H1, W1, OC), lambda n: (n, 0, 0, 0)),
            pl.BlockSpec((1, 1, OC), lambda n: (0, 0, 0)),
            pl.BlockSpec((1, 1, OC), lambda n: (0, 0, 0)),
            pl.BlockSpec((KH * KW, 1, OC), lambda n: (0, 0, 0)),
            pl.BlockSpec((1, 1), lambda n: (0, 0)),
        ],
        out_specs=pl.BlockSpec((None, H2, W2), lambda n: (n, 0, 0)),
        out_shape=jax.ShapeDtypeStruct((N, H2, W2), jnp.float32),
        compiler_params=pltpu.CompilerParams(
            dimension_semantics=("parallel",)),
    )(y1, scale.reshape(1, 1, OC), shift.reshape(1, 1, OC), w2,
      params["b2"].reshape(1, 1))

    return out.reshape(N, 1, H2, W2)                           # NCHW result


# ----------------------------- pure-JAX reference ---------------------------

def reference_forward(x, c, params, condition_dim):
    N, _, H, W = x.shape
    c_map = jnp.broadcast_to(c.reshape(-1, condition_dim, 1, 1),
                             (N, condition_dim, H, W))
    combined = jnp.concatenate([x, c_map], axis=1)
    dn = ("NCHW", "OIHW", "NCHW")
    y = lax.conv_general_dilated(combined, params["w1"], (1, 1), "VALID",
                                 dimension_numbers=dn)
    y = y + params["b1"].reshape(1, -1, 1, 1)
    mean = jnp.mean(y, axis=(0, 2, 3), keepdims=True)
    var = jnp.mean((y - mean) ** 2, axis=(0, 2, 3), keepdims=True)
    y = (y - mean) * lax.rsqrt(var + 1e-5)
    y = y * params["gamma"].reshape(1, -1, 1, 1) + params["beta"].reshape(1, -1, 1, 1)
    y = jnp.where(y > 0, y, 0.2 * y)
    y = lax.conv_general_dilated(y, params["w2"], (1, 1), "VALID",
                                 dimension_numbers=dn)
    return y + params["b2"].reshape(1, -1, 1, 1)


# ----------------------------------- main ------------------------------------

if __name__ == "__main__":
    # Small shapes consistent with the module: spatial 7x7 so two valid 4x4
    # convs produce a 1x1 output (docstring: cond_out shape [1, 1, 1]).
    N, in_chans, condition_dim, out_chans = 2, 4, 4, 8
    H = W = 7

    key = jax.random.PRNGKey(0)
    kx, kc, kp = jax.random.split(key, 3)
    x = jax.random.normal(kx, (N, in_chans, H, W), jnp.float32)
    c = jax.random.normal(kc, (N, condition_dim), jnp.float32)
    params = init_params(kp, in_chans, condition_dim, out_chans)

    out = cond_discriminator_forward(
        x, c, params,
        in_chans=in_chans, condition_dim=condition_dim, out_chans=out_chans)
    out = jax.block_until_ready(out)

    ref = reference_forward(x, c, params, condition_dim)
    assert out.shape == (N, 1, H - 6, W - 6), out.shape
    assert jnp.allclose(out, ref, atol=1e-3, rtol=1e-3), (out, ref)

    print("KERNEL_OK")
</pallas_src>

<mosaic_0001>
module attributes {stable_mosaic.version = 11 : i64} {
  func.func @conv1_kernel(%arg0: i32, %arg1: memref<1x7x7x4xf32, #tpu.memory_space<vmem>>, %arg2: memref<1x1x1x8xf32, #tpu.memory_space<vmem>>, %arg3: memref<64x1x8xf32, #tpu.memory_space<vmem>>, %arg4: memref<1x4x4x8xf32, #tpu.memory_space<vmem>>, %arg5: memref<1x1x1x8xf32, #tpu.memory_space<vmem>>, %arg6: memref<1x1x1x8xf32, #tpu.memory_space<vmem>>) attributes {dimension_semantics = [#tpu.dimension_semantics<parallel>], iteration_bounds = array<i64: 2>, scalar_prefetch = 0 : i64, scratch_operands = 0 : i64, tpu.core_type = #tpu.core_type<tc>, window_params = [{transform_indices = @transform_0, window_bounds = array<i64: 1, 7, 7, 4>}, {transform_indices = @transform_1, window_bounds = array<i64: 1, 1, 1, 8>}, {pipeline_mode = #tpu.pipeline_mode<synchronous>, transform_indices = @transform_2, window_bounds = array<i64: 64, 1, 8>}, {transform_indices = @transform_3, window_bounds = array<i64: 1, 4, 4, 8>}, {transform_indices = @transform_4, window_bounds = array<i64: 1, 1, 1, 8>}, {transform_indices = @transform_5, window_bounds = array<i64: 1, 1, 1, 8>}]} {
    %c0 = arith.constant 0 : index
    %c0_0 = arith.constant 0 : index
    %c0_1 = arith.constant 0 : index
    %c0_2 = arith.constant 0 : index
    %0 = vector.load %arg1[%c0, %c0_0, %c0_1, %c0_2] : memref<1x7x7x4xf32, #tpu.memory_space<vmem>>, vector<1x7x7x4xf32>
    %1 = vector.shape_cast %0 : vector<1x7x7x4xf32> to vector<7x7x4xf32>
    %c0_3 = arith.constant 0 : index
    %c0_4 = arith.constant 0 : index
    %c0_5 = arith.constant 0 : index
    %2 = vector.load %arg3[%c0_3, %c0_4, %c0_5] : memref<64x1x8xf32, #tpu.memory_space<vmem>>, vector<64x1x8xf32>
    %cst = arith.constant 0.000000e+00 : f32
    %3 = vector.broadcast %cst : f32 to vector<4x4x8xf32>
    %4 = vector.extract_strided_slice %1 {offsets = [0, 0, 0], sizes = [4, 4, 4], strides = [1, 1, 1]} : vector<7x7x4xf32> to vector<4x4x4xf32>
    %5 = vector.extract_strided_slice %4 {offsets = [0, 0, 0], sizes = [4, 4, 1], strides = [1, 1, 1]} : vector<4x4x4xf32> to vector<4x4x1xf32>
    %6 = vector.extract_strided_slice %2 {offsets = [0, 0, 0], sizes = [1, 1, 8], strides = [1, 1, 1]} : vector<64x1x8xf32> to vector<1x1x8xf32>
    %7 = vector.broadcast %5 : vector<4x4x1xf32> to vector<4x4x8xf32>
    %8 = vector.broadcast %6 : vector<1x1x8xf32> to vector<4x4x8xf32>
    %9 = arith.mulf %7, %8 : vector<4x4x8xf32>
    %10 = arith.addf %3, %9 : vector<4x4x8xf32>
    %11 = vector.extract_strided_slice %4 {offsets = [0, 0, 1], sizes = [4, 4, 1], strides = [1, 1, 1]} : vector<4x4x4xf32> to vector<4x4x1xf32>
    %12 = vector.extract_strided_slice %2 {offsets = [1, 0, 0], sizes = [1, 1, 8], strides = [1, 1, 1]} : vector<64x1x8xf32> to vector<1x1x8xf32>
    %13 = vector.broadcast %11 : vector<4x4x1xf32> to vector<4x4x8xf32>
    %14 = vector.broadcast %12 : vector<1x1x8xf32> to vector<4x4x8xf32>
    %15 = arith.mulf %13, %14 : vector<4x4x8xf32>
    %16 = arith.addf %10, %15 : vector<4x4x8xf32>
    %17 = vector.extract_strided_slice %4 {offsets = [0, 0, 2], sizes = [4, 4, 1], strides = [1, 1, 1]} : vector<4x4x4xf32> to vector<4x4x1xf32>
    %18 = vector.extract_strided_slice %2 {offsets = [2, 0, 0], sizes = [1, 1, 8], strides = [1, 1, 1]} : vector<64x1x8xf32> to vector<1x1x8xf32>
    %19 = vector.broadcast %17 : vector<4x4x1xf32> to vector<4x4x8xf32>
    %20 = vector.broadcast %18 : vector<1x1x8xf32> to vector<4x4x8xf32>
    %21 = arith.mulf %19, %20 : vector<4x4x8xf32>
    %22 = arith.addf %16, %21 : vector<4x4x8xf32>
    %23 = vector.extract_strided_slice %4 {offsets = [0, 0, 3], sizes = [4, 4, 1], strides = [1, 1, 1]} : vector<4x4x4xf32> to vector<4x4x1xf32>
    %24 = vector.extract_strided_slice %2 {offsets = [3, 0, 0], sizes = [1, 1, 8], strides = [1, 1, 1]} : vector<64x1x8xf32> to vector<1x1x8xf32>
    %25 = vector.broadcast %23 : vector<4x4x1xf32> to vector<4x4x8xf32>
    %26 = vector.broadcast %24 : vector<1x1x8xf32> to vector<4x4x8xf32>
    %27 = arith.mulf %25, %26 : vector<4x4x8xf32>
    %28 = arith.addf %22, %27 : vector<4x4x8xf32>
    %29 = vector.extract_strided_slice %1 {offsets = [0, 1, 0], sizes = [4, 4, 4], strides = [1, 1, 1]} : vector<7x7x4xf32> to vector<4x4x4xf32>
    %30 = vector.extract_strided_slice %29 {offsets = [0, 0, 0], sizes = [4, 4, 1], strides = [1, 1, 1]} : vector<4x4x4xf32> to vector<4x4x1xf32>
    %31 = vector.extract_strided_slice %2 {offsets = [4, 0, 0], sizes = [1, 1, 8], strides = [1, 1, 1]} : vector<64x1x8xf32> to vector<1x1x8xf32>
    %32 = vector.broadcast %30 : vector<4x4x1xf32> to vector<4x4x8xf32>
    %33 = vector.broadcast %31 : vector<1x1x8xf32> to vector<4x4x8xf32>
    %34 = arith.mulf %32, %33 : vector<4x4x8xf32>
    %35 = arith.addf %28, %34 : vector<4x4x8xf32>
    %36 = vector.extract_strided_slice %29 {offsets = [0, 0, 1], sizes = [4, 4, 1], strides = [1, 1, 1]} : vector<4x4x4xf32> to vector<4x4x1xf32>
    %37 = vector.extract_strided_slice %2 {offsets = [5, 0, 0], sizes = [1, 1, 8], strides = [1, 1, 1]} : vector<64x1x8xf32> to vector<1x1x8xf32>
    %38 = vector.broadcast %36 : vector<4x4x1xf32> to vector<4x4x8xf32>
    %39 = vector.broadcast %37 : vector<1x1x8xf32> to vector<4x4x8xf32>
    %40 = arith.mulf %38, %39 : vector<4x4x8xf32>
    %41 = arith.addf %35, %40 : vector<4x4x8xf32>
    %42 = vector.extract_strided_slice %29 {offsets = [0, 0, 2], sizes = [4, 4, 1], strides = [1, 1, 1]} : vector<4x4x4xf32> to vector<4x4x1xf32>
    %43 = vector.extract_strided_slice %2 {offsets = [6, 0, 0], sizes = [1, 1, 8], strides = [1, 1, 1]} : vector<64x1x8xf32> to vector<1x1x8xf32>
    %44 = vector.broadcast %42 : vector<4x4x1xf32> to vector<4x4x8xf32>
    %45 = vector.broadcast %43 : vector<1x1x8xf32> to vector<4x4x8xf32>
    %46 = arith.mulf %44, %45 : vector<4x4x8xf32>
    %47 = arith.addf %41, %46 : vector<4x4x8xf32>
    %48 = vector.extract_strided_slice %29 {offsets = [0, 0, 3], sizes = [4, 4, 1], strides = [1, 1, 1]} : vector<4x4x4xf32> to vector<4x4x1xf32>
    %49 = vector.extract_strided_slice %2 {offsets = [7, 0, 0], sizes = [1, 1, 8], strides = [1, 1, 1]} : vector<64x1x8xf32> to vector<1x1x8xf32>
    %50 = vector.broadcast %48 : vector<4x4x1xf32> to vector<4x4x8xf32>
    %51 = vector.broadcast %49 : vector<1x1x8xf32> to vector<4x4x8xf32>
    %52 = arith.mulf %50, %51 : vector<4x4x8xf32>
    %53 = arith.addf %47, %52 : vector<4x4x8xf32>
    %54 = vector.extract_strided_slice %1 {offsets = [0, 2, 0], sizes = [4, 4, 4], strides = [1, 1, 1]} : vector<7x7x4xf32> to vector<4x4x4xf32>
    %55 = vector.extract_strided_slice %54 {offsets = [0, 0, 0], sizes = [4, 4, 1], strides = [1, 1, 1]} : vector<4x4x4xf32> to vector<4x4x1xf32>
    %56 = vector.extract_strided_slice %2 {offsets = [8, 0, 0], sizes = [1, 1, 8], strides = [1, 1, 1]} : vector<64x1x8xf32> to vector<1x1x8xf32>
    %57 = vector.broadcast %55 : vector<4x4x1xf32> to vector<4x4x8xf32>
    %58 = vector.broadcast %56 : vector<1x1x8xf32> to vector<4x4x8xf32>
    %59 = arith.mulf %57, %58 : vector<4x4x8xf32>
    %60 = arith.addf %53, %59 : vector<4x4x8xf32>
    %61 = vector.extract_strided_slice %54 {offsets = [0, 0, 1], sizes = [4, 4, 1], strides = [1, 1, 1]} : vector<4x4x4xf32> to vector<4x4x1xf32>
    %62 = vector.extract_strided_slice %2 {offsets = [9, 0, 0], sizes = [1, 1, 8], strides = [1, 1, 1]} : vector<64x1x8xf32> to vector<1x1x8xf32>
    %63 = vector.broadcast %61 : vector<4x4x1xf32> to vector<4x4x8xf32>
    %64 = vector.broadcast %62 : vector<1x1x8xf32> to vector<4x4x8xf32>
    %65 = arith.mulf %63, %64 : vector<4x4x8xf32>
    %66 = arith.addf %60, %65 : vector<4x4x8xf32>
    %67 = vector.extract_strided_slice %54 {offsets = [0, 0, 2], sizes = [4, 4, 1], strides = [1, 1, 1]} : vector<4x4x4xf32> to vector<4x4x1xf32>
    %68 = vector.extract_strided_slice %2 {offsets = [10, 0, 0], sizes = [1, 1, 8], strides = [1, 1, 1]} : vector<64x1x8xf32> to vector<1x1x8xf32>
    %69 = vector.broadcast %67 : vector<4x4x1xf32> to vector<4x4x8xf32>
    %70 = vector.broadcast %68 : vector<1x1x8xf32> to vector<4x4x8xf32>
    %71 = arith.mulf %69, %70 : vector<4x4x8xf32>
    %72 = arith.addf %66, %71 : vector<4x4x8xf32>
    %73 = vector.extract_strided_slice %54 {offsets = [0, 0, 3], sizes = [4, 4, 1], strides = [1, 1, 1]} : vector<4x4x4xf32> to vector<4x4x1xf32>
    %74 = vector.extract_strided_slice %2 {offsets = [11, 0, 0], sizes = [1, 1, 8], strides = [1, 1, 1]} : vector<64x1x8xf32> to vector<1x1x8xf32>
    %75 = vector.broadcast %73 : vector<4x4x1xf32> to vector<4x4x8xf32>
    %76 = vector.broadcast %74 : vector<1x1x8xf32> to vector<4x4x8xf32>
    %77 = arith.mulf %75, %76 : vector<4x4x8xf32>
    %78 = arith.addf %72, %77 : vector<4x4x8xf32>
    %79 = vector.extract_strided_slice %1 {offsets = [0, 3, 0], sizes = [4, 4, 4], strides = [1, 1, 1]} : vector<7x7x4xf32> to vector<4x4x4xf32>
    %80 = vector.extract_strided_slice %79 {offsets = [0, 0, 0], sizes = [4, 4, 1], strides = [1, 1, 1]} : vector<4x4x4xf32> to vector<4x4x1xf32>
    %81 = vector.extract_strided_slice %2 {offsets = [12, 0, 0], sizes = [1, 1, 8], strides = [1, 1, 1]} : vector<64x1x8xf32> to vector<1x1x8xf32>
    %82 = vector.broadcast %80 : vector<4x4x1xf32> to vector<4x4x8xf32>
    %83 = vector.broadcast %81 : vector<1x1x8xf32> to vector<4x4x8xf32>
    %84 = arith.mulf %82, %83 : vector<4x4x8xf32>
    %85 = arith.addf %78, %84 : vector<4x4x8xf32>
    %86 = vector.extract_strided_slice %79 {offsets = [0, 0, 1], sizes = [4, 4, 1], strides = [1, 1, 1]} : vector<4x4x4xf32> to vector<4x4x1xf32>
    %87 = vector.extract_strided_slice %2 {offsets = [13, 0, 0], sizes = [1, 1, 8], strides = [1, 1, 1]} : vector<64x1x8xf32> to vector<1x1x8xf32>
    %88 = vector.broadcast %86 : vector<4x4x1xf32> to vector<4x4x8xf32>
    %89 = vector.broadcast %87 : vector<1x1x8xf32> to vector<4x4x8xf32>
    %90 = arith.mulf %88, %89 : vector<4x4x8xf32>
    %91 = arith.addf %85, %90 : vector<4x4x8xf32>
    %92 = vector.extract_strided_slice %79 {offsets = [0, 0, 2], sizes = [4, 4, 1], strides = [1, 1, 1]} : vector<4x4x4xf32> to vector<4x4x1xf32>
    %93 = vector.extract_strided_slice %2 {offsets = [14, 0, 0], sizes = [1, 1, 8], strides = [1, 1, 1]} : vector<64x1x8xf32> to vector<1x1x8xf32>
    %94 = vector.broadcast %92 : vector<4x4x1xf32> to vector<4x4x8xf32>
    %95 = vector.broadcast %93 : vector<1x1x8xf32> to vector<4x4x8xf32>
    %96 = arith.mulf %94, %95 : vector<4x4x8xf32>
    %97 = arith.addf %91, %96 : vector<4x4x8xf32>
    %98 = vector.extract_strided_slice %79 {offsets = [0, 0, 3], sizes = [4, 4, 1], strides = [1, 1, 1]} : vector<4x4x4xf32> to vector<4x4x1xf32>
    %99 = vector.extract_strided_slice %2 {offsets = [15, 0, 0], sizes = [1, 1, 8], strides = [1, 1, 1]} : vector<64x1x8xf32> to vector<1x1x8xf32>
    %100 = vector.broadcast %98 : vector<4x4x1xf32> to vector<4x4x8xf32>
    %101 = vector.broadcast %99 : vector<1x1x8xf32> to vector<4x4x8xf32>
    %102 = arith.mulf %100, %101 : vector<4x4x8xf32>
    %103 = arith.addf %97, %102 : vector<4x4x8xf32>
    %104 = vector.extract_strided_slice %1 {offsets = [1, 0, 0], sizes = [4, 4, 4], strides = [1, 1, 1]} : vector<7x7x4xf32> to vector<4x4x4xf32>
    %105 = vector.extract_strided_slice %104 {offsets = [0, 0, 0], sizes = [4, 4, 1], strides = [1, 1, 1]} : vector<4x4x4xf32> to vector<4x4x1xf32>
    %106 = vector.extract_strided_slice %2 {offsets = [16, 0, 0], sizes = [1, 1, 8], strides = [1, 1, 1]} : vector<64x1x8xf32> to vector<1x1x8xf32>
    %107 = vector.broadcast %105 : vector<4x4x1xf32> to vector<4x4x8xf32>
    %108 = vector.broadcast %106 : vector<1x1x8xf32> to vector<4x4x8xf32>
    %109 = arith.mulf %107, %108 : vector<4x4x8xf32>
    %110 = arith.addf %103, %109 : vector<4x4x8xf32>
    %111 = vector.extract_strided_slice %104 {offsets = [0, 0, 1], sizes = [4, 4, 1], strides = [1, 1, 1]} : vector<4x4x4xf32> to vector<4x4x1xf32>
    %112 = vector.extract_strided_slice %2 {offsets = [17, 0, 0], sizes = [1, 1, 8], strides = [1, 1, 1]} : vector<64x1x8xf32> to vector<1x1x8xf32>
    %113 = vector.broadcast %111 : vector<4x4x1xf32> to vector<4x4x8xf32>
    %114 = vector.broadcast %112 : vector<1x1x8xf32> to vector<4x4x8xf32>
    %115 = arith.mulf %113, %114 : vector<4x4x8xf32>
    %116 = arith.addf %110, %115 : vector<4x4x8xf32>
    %117 = vector.extract_strided_slice %104 {offsets = [0, 0, 2], sizes = [4, 4, 1], strides = [1, 1, 1]} : vector<4x4x4xf32> to vector<4x4x1xf32>
    %118 = vector.extract_strided_slice %2 {offsets = [18, 0, 0], sizes = [1, 1, 8], strides = [1, 1, 1]} : vector<64x1x8xf32> to vector<1x1x8xf32>
    %119 = vector.broadcast %117 : vector<4x4x1xf32> to vector<4x4x8xf32>
    %120 = vector.broadcast %118 : vector<1x1x8xf32> to vector<4x4x8xf32>
    %121 = arith.mulf %119, %120 : vector<4x4x8xf32>
    %122 = arith.addf %116, %121 : vector<4x4x8xf32>
    %123 = vector.extract_strided_slice %104 {offsets = [0, 0, 3], sizes = [4, 4, 1], strides = [1, 1, 1]} : vector<4x4x4xf32> to vector<4x4x1xf32>
    %124 = vector.extract_strided_slice %2 {offsets = [19, 0, 0], sizes = [1, 1, 8], strides = [1, 1, 1]} : vector<64x1x8xf32> to vector<1x1x8xf32>
    %125 = vector.broadcast %123 : vector<4x4x1xf32> to vector<4x4x8xf32>
    %126 = vector.broadcast %124 : vector<1x1x8xf32> to vector<4x4x8xf32>
    %127 = arith.mulf %125, %126 : vector<4x4x8xf32>
    %128 = arith.addf %122, %127 : vector<4x4x8xf32>
    %129 = vector.extract_strided_slice %1 {offsets = [1, 1, 0], sizes = [4, 4, 4], strides = [1, 1, 1]} : vector<7x7x4xf32> to vector<4x4x4xf32>
    %130 = vector.extract_strided_slice %129 {offsets = [0, 0, 0], sizes = [4, 4, 1], strides = [1, 1, 1]} : vector<4x4x4xf32> to vector<4x4x1xf32>
    %131 = vector.extract_strided_slice %2 {offsets = [20, 0, 0], sizes = [1, 1, 8], strides = [1, 1, 1]} : vector<64x1x8xf32> to vector<1x1x8xf32>
    %132 = vector.broadcast %130 : vector<4x4x1xf32> to vector<4x4x8xf32>
    %133 = vector.broadcast %131 : vector<1x1x8xf32> to vector<4x4x8xf32>
    %134 = arith.mulf %132, %133 : vector<4x4x8xf32>
    %135 = arith.addf %128, %134 : vector<4x4x8xf32>
    %136 = vector.extract_strided_slice %129 {offsets = [0, 0, 1], sizes = [4, 4, 1], strides = [1, 1, 1]} : vector<4x4x4xf32> to vector<4x4x1xf32>
    %137 = vector.extract_strided_slice %2 {offsets = [21, 0, 0], sizes = [1, 1, 8], strides = [1, 1, 1]} : vector<64x1x8xf32> to vector<1x1x8xf32>
    %138 = vector.broadcast %136 : vector<4x4x1xf32> to vector<4x4x8xf32>
    %139 = vector.broadcast %137 : vector<1x1x8xf32> to vector<4x4x8xf32>
    %140 = arith.mulf %138, %139 : vector<4x4x8xf32>
    %141 = arith.addf %135, %140 : vector<4x4x8xf32>
    %142 = vector.extract_strided_slice %129 {offsets = [0, 0, 2], sizes = [4, 4, 1], strides = [1, 1, 1]} : vector<4x4x4xf32> to vector<4x4x1xf32>
    %143 = vector.extract_strided_slice %2 {offsets = [22, 0, 0], sizes = [1, 1, 8], strides = [1, 1, 1]} : vector<64x1x8xf32> to vector<1x1x8xf32>
    %144 = vector.broadcast %142 : vector<4x4x1xf32> to vector<4x4x8xf32>
    %145 = vector.broadcast %143 : vector<1x1x8xf32> to vector<4x4x8xf32>
    %146 = arith.mulf %144, %145 : vector<4x4x8xf32>
    %147 = arith.addf %141, %146 : vector<4x4x8xf32>
    %148 = vector.extract_strided_slice %129 {offsets = [0, 0, 3], sizes = [4, 4, 1], strides = [1, 1, 1]} : vector<4x4x4xf32> to vector<4x4x1xf32>
    %149 = vector.extract_strided_slice %2 {offsets = [23, 0, 0], sizes = [1, 1, 8], strides = [1, 1, 1]} : vector<64x1x8xf32> to vector<1x1x8xf32>
    %150 = vector.broadcast %148 : vector<4x4x1xf32> to vector<4x4x8xf32>
    %151 = vector.broadcast %149 : vector<1x1x8xf32> to vector<4x4x8xf32>
    %152 = arith.mulf %150, %151 : vector<4x4x8xf32>
    %153 = arith.addf %147, %152 : vector<4x4x8xf32>
    %154 = vector.extract_strided_slice %1 {offsets = [1, 2, 0], sizes = [4, 4, 4], strides = [1, 1, 1]} : vector<7x7x4xf32> to vector<4x4x4xf32>
    %155 = vector.extract_strided_slice %154 {offsets = [0, 0, 0], sizes = [4, 4, 1], strides = [1, 1, 1]} : vector<4x4x4xf32> to vector<4x4x1xf32>
    %156 = vector.extract_strided_slice %2 {offsets = [24, 0, 0], sizes = [1, 1, 8], strides = [1, 1, 1]} : vector<64x1x8xf32> to vector<1x1x8xf32>
    %157 = vector.broadcast %155 : vector<4x4x1xf32> to vector<4x4x8xf32>
    %158 = vector.broadcast %156 : vector<1x1x8xf32> to vector<4x4x8xf32>
    %159 = arith.mulf %157, %158 : vector<4x4x8xf32>
    %160 = arith.addf %153, %159 : vector<4x4x8xf32>
    %161 = vector.extract_strided_slice %154 {offsets = [0, 0, 1], sizes = [4, 4, 1], strides = [1, 1, 1]} : vector<4x4x4xf32> to vector<4x4x1xf32>
    %162 = vector.extract_strided_slice %2 {offsets = [25, 0, 0], sizes = [1, 1, 8], strides = [1, 1, 1]} : vector<64x1x8xf32> to vector<1x1x8xf32>
    %163 = vector.broadcast %161 : vector<4x4x1xf32> to vector<4x4x8xf32>
    %164 = vector.broadcast %162 : vector<1x1x8xf32> to vector<4x4x8xf32>
    %165 = arith.mulf %163, %164 : vector<4x4x8xf32>
    %166 = arith.addf %160, %165 : vector<4x4x8xf32>
    %167 = vector.extract_strided_slice %154 {offsets = [0, 0, 2], sizes = [4, 4, 1], strides = [1, 1, 1]} : vector<4x4x4xf32> to vector<4x4x1xf32>
    %168 = vector.extract_strided_slice %2 {offsets = [26, 0, 0], sizes = [1, 1, 8], strides = [1, 1, 1]} : vector<64x1x8xf32> to vector<1x1x8xf32>
    %169 = vector.broadcast %167 : vector<4x4x1xf32> to vector<4x4x8xf32>
    %170 = vector.broadcast %168 : vector<1x1x8xf32> to vector<4x4x8xf32>
    %171 = arith.mulf %169, %170 : vector<4x4x8xf32>
    %172 = arith.addf %166, %171 : vector<4x4x8xf32>
    %173 = vector.extract_strided_slice %154 {offsets = [0, 0, 3], sizes = [4, 4, 1], strides = [1, 1, 1]} : vector<4x4x4xf32> to vector<4x4x1xf32>
    %174 = vector.extract_strided_slice %2 {offsets = [27, 0, 0], sizes = [1, 1, 8], strides = [1, 1, 1]} : vector<64x1x8xf32> to vector<1x1x8xf32>
    %175 = vector.broadcast %173 : vector<4x4x1xf32> to vector<4x4x8xf32>
    %176 = vector.broadcast %174 : vector<1x1x8xf32> to vector<4x4x8xf32>
    %177 = arith.mulf %175, %176 : vector<4x4x8xf32>
    %178 = arith.addf %172, %177 : vector<4x4x8xf32>
    %179 = vector.extract_strided_slice %1 {offsets = [1, 3, 0], sizes = [4, 4, 4], strides = [1, 1, 1]} : vector<7x7x4xf32> to vector<4x4x4xf32>
    %180 = vector.extract_strided_slice %179 {offsets = [0, 0, 0], sizes = [4, 4, 1], strides = [1, 1, 1]} : vector<4x4x4xf32> to vector<4x4x1xf32>
    %181 = vector.extract_strided_slice %2 {offsets = [28, 0, 0], sizes = [1, 1, 8], strides = [1, 1, 1]} : vector<64x1x8xf32> to vector<1x1x8xf32>
    %182 = vector.broadcast %180 : vector<4x4x1xf32> to vector<4x4x8xf32>
    %183 = vector.broadcast %181 : vector<1x1x8xf32> to vector<4x4x8xf32>
    %184 = arith.mulf %182, %183 : vector<4x4x8xf32>
    %185 = arith.addf %178, %184 : vector<4x4x8xf32>
    %186 = vector.extract_strided_slice %179 {offsets = [0, 0, 1], sizes = [4, 4, 1], strides = [1, 1, 1]} : vector<4x4x4xf32> to vector<4x4x1xf32>
    %187 = vector.extract_strided_slice %2 {offsets = [29, 0, 0], sizes = [1, 1, 8], strides = [1, 1, 1]} : vector<64x1x8xf32> to vector<1x1x8xf32>
    %188 = vector.broadcast %186 : vector<4x4x1xf32> to vector<4x4x8xf32>
    %189 = vector.broadcast %187 : vector<1x1x8xf32> to vector<4x4x8xf32>
    %190 = arith.mulf %188, %189 : vector<4x4x8xf32>
    %191 = arith.addf %185, %190 : vector<4x4x8xf32>
    %192 = vector.extract_strided_slice %179 {offsets = [0, 0, 2], sizes = [4, 4, 1], strides = [1, 1, 1]} : vector<4x4x4xf32> to vector<4x4x1xf32>
    %193 = vector.extract_strided_slice %2 {offsets = [30, 0, 0], sizes = [1, 1, 8], strides = [1, 1, 1]} : vector<64x1x8xf32> to vector<1x1x8xf32>
    %194 = vector.broadcast %192 : vector<4x4x1xf32> to vector<4x4x8xf32>
    %195 = vector.broadcast %193 : vector<1x1x8xf32> to vector<4x4x8xf32>
    %196 = arith.mulf %194, %195 : vector<4x4x8xf32>
    %197 = arith.addf %191, %196 : vector<4x4x8xf32>
    %198 = vector.extract_strided_slice %179 {offsets = [0, 0, 3], sizes = [4, 4, 1], strides = [1, 1, 1]} : vector<4x4x4xf32> to vector<4x4x1xf32>
    %199 = vector.extract_strided_slice %2 {offsets = [31, 0, 0], sizes = [1, 1, 8], strides = [1, 1, 1]} : vector<64x1x8xf32> to vector<1x1x8xf32>
    %200 = vector.broadcast %198 : vector<4x4x1xf32> to vector<4x4x8xf32>
    %201 = vector.broadcast %199 : vector<1x1x8xf32> to vector<4x4x8xf32>
    %202 = arith.mulf %200, %201 : vector<4x4x8xf32>
    %203 = arith.addf %197, %202 : vector<4x4x8xf32>
    %204 = vector.extract_strided_slice %1 {offsets = [2, 0, 0], sizes = [4, 4, 4], strides = [1, 1, 1]} : vector<7x7x4xf32> to vector<4x4x4xf32>
    %205 = vector.extract_strided_slice %204 {offsets = [0, 0, 0], sizes = [4, 4, 1], strides = [1, 1, 1]} : vector<4x4x4xf32> to vector<4x4x1xf32>
    %206 = vector.extract_strided_slice %2 {offsets = [32, 0, 0], sizes = [1, 1, 8], strides = [1, 1, 1]} : vector<64x1x8xf32> to vector<1x1x8xf32>
    %207 = vector.broadcast %205 : vector<4x4x1xf32> to vector<4x4x8xf32>
    %208 = vector.broadcast %206 : vector<1x1x8xf32> to vector<4x4x8xf32>
    %209 = arith.mulf %207, %208 : vector<4x4x8xf32>
    %210 = arith.addf %203, %209 : vector<4x4x8xf32>
    %211 = vector.extract_strided_slice %204 {offsets = [0, 0, 1], sizes = [4, 4, 1], strides = [1, 1, 1]} : vector<4x4x4xf32> to vector<4x4x1xf32>
    %212 = vector.extract_strided_slice %2 {offsets = [33, 0, 0], sizes = [1, 1, 8], strides = [1, 1, 1]} : vector<64x1x8xf32> to vector<1x1x8xf32>
    %213 = vector.broadcast %211 : vector<4x4x1xf32> to vector<4x4x8xf32>
    %214 = vector.broadcast %212 : vector<1x1x8xf32> to vector<4x4x8xf32>
    %215 = arith.mulf %213, %214 : vector<4x4x8xf32>
    %216 = arith.addf %210, %215 : vector<4x4x8xf32>
    %217 = vector.extract_strided_slice %204 {offsets = [0, 0, 2], sizes = [4, 4, 1], strides = [1, 1, 1]} : vector<4x4x4xf32> to vector<4x4x1xf32>
    %218 = vector.extract_strided_slice %2 {offsets = [34, 0, 0], sizes = [1, 1, 8], strides = [1, 1, 1]} : vector<64x1x8xf32> to vector<1x1x8xf32>
    %219 = vector.broadcast %217 : vector<4x4x1xf32> to vector<4x4x8xf32>
    %220 = vector.broadcast %218 : vector<1x1x8xf32> to vector<4x4x8xf32>
    %221 = arith.mulf %219, %220 : vector<4x4x8xf32>
    %222 = arith.addf %216, %221 : vector<4x4x8xf32>
    %223 = vector.extract_strided_slice %204 {offsets = [0, 0, 3], sizes = [4, 4, 1], strides = [1, 1, 1]} : vector<4x4x4xf32> to vector<4x4x1xf32>
    %224 = vector.extract_strided_slice %2 {offsets = [35, 0, 0], sizes = [1, 1, 8], strides = [1, 1, 1]} : vector<64x1x8xf32> to vector<1x1x8xf32>
    %225 = vector.broadcast %223 : vector<4x4x1xf32> to vector<4x4x8xf32>
    %226 = vector.broadcast %224 : vector<1x1x8xf32> to vector<4x4x8xf32>
    %227 = arith.mulf %225, %226 : vector<4x4x8xf32>
    %228 = arith.addf %222, %227 : vector<4x4x8xf32>
    %229 = vector.extract_strided_slice %1 {offsets = [2, 1, 0], sizes = [4, 4, 4], strides = [1, 1, 1]} : vector<7x7x4xf32> to vector<4x4x4xf32>
    %230 = vector.extract_strided_slice %229 {offsets = [0, 0, 0], sizes = [4, 4, 1], strides = [1, 1, 1]} : vector<4x4x4xf32> to vector<4x4x1xf32>
    %231 = vector.extract_strided_slice %2 {offsets = [36, 0, 0], sizes = [1, 1, 8], strides = [1, 1, 1]} : vector<64x1x8xf32> to vector<1x1x8xf32>
    %232 = vector.broadcast %230 : vector<4x4x1xf32> to vector<4x4x8xf32>
    %233 = vector.broadcast %231 : vector<1x1x8xf32> to vector<4x4x8xf32>
    %234 = arith.mulf %232, %233 : vector<4x4x8xf32>
    %235 = arith.addf %228, %234 : vector<4x4x8xf32>
    %236 = vector.extract_strided_slice %229 {offsets = [0, 0, 1], sizes = [4, 4, 1], strides = [1, 1, 1]} : vector<4x4x4xf32> to vector<4x4x1xf32>
    %237 = vector.extract_strided_slice %2 {offsets = [37, 0, 0], sizes = [1, 1, 8], strides = [1, 1, 1]} : vector<64x1x8xf32> to vector<1x1x8xf32>
    %238 = vector.broadcast %236 : vector<4x4x1xf32> to vector<4x4x8xf32>
    %239 = vector.broadcast %237 : vector<1x1x8xf32> to vector<4x4x8xf32>
    %240 = arith.mulf %238, %239 : vector<4x4x8xf32>
    %241 = arith.addf %235, %240 : vector<4x4x8xf32>
    %242 = vector.extract_strided_slice %229 {offsets = [0, 0, 2], sizes = [4, 4, 1], strides = [1, 1, 1]} : vector<4x4x4xf32> to vector<4x4x1xf32>
    %243 = vector.extract_strided_slice %2 {offsets = [38, 0, 0], sizes = [1, 1, 8], strides = [1, 1, 1]} : vector<64x1x8xf32> to vector<1x1x8xf32>
    %244 = vector.broadcast %242 : vector<4x4x1xf32> to vector<4x4x8xf32>
    %245 = vector.broadcast %243 : vector<1x1x8xf32> to vector<4x4x8xf32>
    %246 = arith.mulf %244, %245 : vector<4x4x8xf32>
    %247 = arith.addf %241, %246 : vector<4x4x8xf32>
    %248 = vector.extract_strided_slice %229 {offsets = [0, 0, 3], sizes = [4, 4, 1], strides = [1, 1, 1]} : vector<4x4x4xf32> to vector<4x4x1xf32>
    %249 = vector.extract_strided_slice %2 {offsets = [39, 0, 0], sizes = [1, 1, 8], strides = [1, 1, 1]} : vector<64x1x8xf32> to vector<1x1x8xf32>
    %250 = vector.broadcast %248 : vector<4x4x1xf32> to vector<4x4x8xf32>
    %251 = vector.broadcast %249 : vector<1x1x8xf32> to vector<4x4x8xf32>
    %252 = arith.mulf %250, %251 : vector<4x4x8xf32>
    %253 = arith.addf %247, %252 : vector<4x4x8xf32>
    %254 = vector.extract_strided_slice %1 {offsets = [2, 2, 0], sizes = [4, 4, 4], strides = [1, 1, 1]} : vector<7x7x4xf32> to vector<4x4x4xf32>
    %255 = vector.extract_strided_slice %254 {offsets = [0, 0, 0], sizes = [4, 4, 1], strides = [1, 1, 1]} : vector<4x4x4xf32> to vector<4x4x1xf32>
    %256 = vector.extract_strided_slice %2 {offsets = [40, 0, 0], sizes = [1, 1, 8], strides = [1, 1, 1]} : vector<64x1x8xf32> to vector<1x1x8xf32>
    %257 = vector.broadcast %255 : vector<4x4x1xf32> to vector<4x4x8xf32>
    %258 = vector.broadcast %256 : vector<1x1x8xf32> to vector<4x4x8xf32>
    %259 = arith.mulf %257, %258 : vector<4x4x8xf32>
    %260 = arith.addf %253, %259 : vector<4x4x8xf32>
    %261 = vector.extract_strided_slice %254 {offsets = [0, 0, 1], sizes = [4, 4, 1], strides = [1, 1, 1]} : vector<4x4x4xf32> to vector<4x4x1xf32>
    %262 = vector.extract_strided_slice %2 {offsets = [41, 0, 0], sizes = [1, 1, 8], strides = [1, 1, 1]} : vector<64x1x8xf32> to vector<1x1x8xf32>
    %263 = vector.broadcast %261 : vector<4x4x1xf32> to vector<4x4x8xf32>
    %264 = vector.broadcast %262 : vector<1x1x8xf32> to vector<4x4x8xf32>
    %265 = arith.mulf %263, %264 : vector<4x4x8xf32>
    %266 = arith.addf %260, %265 : vector<4x4x8xf32>
    %267 = vector.extract_strided_slice %254 {offsets = [0, 0, 2], sizes = [4, 4, 1], strides = [1, 1, 1]} : vector<4x4x4xf32> to vector<4x4x1xf32>
    %268 = vector.extract_strided_slice %2 {offsets = [42, 0, 0], sizes = [1, 1, 8], strides = [1, 1, 1]} : vector<64x1x8xf32> to vector<1x1x8xf32>
    %269 = vector.broadcast %267 : vector<4x4x1xf32> to vector<4x4x8xf32>
    %270 = vector.broadcast %268 : vector<1x1x8xf32> to vector<4x4x8xf32>
    %271 = arith.mulf %269, %270 : vector<4x4x8xf32>
    %272 = arith.addf %266, %271 : vector<4x4x8xf32>
    %273 = vector.extract_strided_slice %254 {offsets = [0, 0, 3], sizes = [4, 4, 1], strides = [1, 1, 1]} : vector<4x4x4xf32> to vector<4x4x1xf32>
    %274 = vector.extract_strided_slice %2 {offsets = [43, 0, 0], sizes = [1, 1, 8], strides = [1, 1, 1]} : vector<64x1x8xf32> to vector<1x1x8xf32>
    %275 = vector.broadcast %273 : vector<4x4x1xf32> to vector<4x4x8xf32>
    %276 = vector.broadcast %274 : vector<1x1x8xf32> to vector<4x4x8xf32>
    %277 = arith.mulf %275, %276 : vector<4x4x8xf32>
    %278 = arith.addf %272, %277 : vector<4x4x8xf32>
    %279 = vector.extract_strided_slice %1 {offsets = [2, 3, 0], sizes = [4, 4, 4], strides = [1, 1, 1]} : vector<7x7x4xf32> to vector<4x4x4xf32>
    %280 = vector.extract_strided_slice %279 {offsets = [0, 0, 0], sizes = [4, 4, 1], strides = [1, 1, 1]} : vector<4x4x4xf32> to vector<4x4x1xf32>
    %281 = vector.extract_strided_slice %2 {offsets = [44, 0, 0], sizes = [1, 1, 8], strides = [1, 1, 1]} : vector<64x1x8xf32> to vector<1x1x8xf32>
    %282 = vector.broadcast %280 : vector<4x4x1xf32> to vector<4x4x8xf32>
    %283 = vector.broadcast %281 : vector<1x1x8xf32> to vector<4x4x8xf32>
    %284 = arith.mulf %282, %283 : vector<4x4x8xf32>
    %285 = arith.addf %278, %284 : vector<4x4x8xf32>
    %286 = vector.extract_strided_slice %279 {offsets = [0, 0, 1], sizes = [4, 4, 1], strides = [1, 1, 1]} : vector<4x4x4xf32> to vector<4x4x1xf32>
    %287 = vector.extract_strided_slice %2 {offsets = [45, 0, 0], sizes = [1, 1, 8], strides = [1, 1, 1]} : vector<64x1x8xf32> to vector<1x1x8xf32>
    %288 = vector.broadcast %286 : vector<4x4x1xf32> to vector<4x4x8xf32>
    %289 = vector.broadcast %287 : vector<1x1x8xf32> to vector<4x4x8xf32>
    %290 = arith.mulf %288, %289 : vector<4x4x8xf32>
    %291 = arith.addf %285, %290 : vector<4x4x8xf32>
    %292 = vector.extract_strided_slice %279 {offsets = [0, 0, 2], sizes = [4, 4, 1], strides = [1, 1, 1]} : vector<4x4x4xf32> to vector<4x4x1xf32>
    %293 = vector.extract_strided_slice %2 {offsets = [46, 0, 0], sizes = [1, 1, 8], strides = [1, 1, 1]} : vector<64x1x8xf32> to vector<1x1x8xf32>
    %294 = vector.broadcast %292 : vector<4x4x1xf32> to vector<4x4x8xf32>
    %295 = vector.broadcast %293 : vector<1x1x8xf32> to vector<4x4x8xf32>
    %296 = arith.mulf %294, %295 : vector<4x4x8xf32>
    %297 = arith.addf %291, %296 : vector<4x4x8xf32>
    %298 = vector.extract_strided_slice %279 {offsets = [0, 0, 3], sizes = [4, 4, 1], strides = [1, 1, 1]} : vector<4x4x4xf32> to vector<4x4x1xf32>
    %299 = vector.extract_strided_slice %2 {offsets = [47, 0, 0], sizes = [1, 1, 8], strides = [1, 1, 1]} : vector<64x1x8xf32> to vector<1x1x8xf32>
    %300 = vector.broadcast %298 : vector<4x4x1xf32> to vector<4x4x8xf32>
    %301 = vector.broadcast %299 : vector<1x1x8xf32> to vector<4x4x8xf32>
    %302 = arith.mulf %300, %301 : vector<4x4x8xf32>
    %303 = arith.addf %297, %302 : vector<4x4x8xf32>
    %304 = vector.extract_strided_slice %1 {offsets = [3, 0, 0], sizes = [4, 4, 4], strides = [1, 1, 1]} : vector<7x7x4xf32> to vector<4x4x4xf32>
    %305 = vector.extract_strided_slice %304 {offsets = [0, 0, 0], sizes = [4, 4, 1], strides = [1, 1, 1]} : vector<4x4x4xf32> to vector<4x4x1xf32>
    %306 = vector.extract_strided_slice %2 {offsets = [48, 0, 0], sizes = [1, 1, 8], strides = [1, 1, 1]} : vector<64x1x8xf32> to vector<1x1x8xf32>
    %307 = vector.broadcast %305 : vector<4x4x1xf32> to vector<4x4x8xf32>
    %308 = vector.broadcast %306 : vector<1x1x8xf32> to vector<4x4x8xf32>
    %309 = arith.mulf %307, %308 : vector<4x4x8xf32>
    %310 = arith.addf %303, %309 : vector<4x4x8xf32>
    %311 = vector.extract_strided_slice %304 {offsets = [0, 0, 1], sizes = [4, 4, 1], strides = [1, 1, 1]} : vector<4x4x4xf32> to vector<4x4x1xf32>
    %312 = vector.extract_strided_slice %2 {offsets = [49, 0, 0], sizes = [1, 1, 8], strides = [1, 1, 1]} : vector<64x1x8xf32> to vector<1x1x8xf32>
    %313 = vector.broadcast %311 : vector<4x4x1xf32> to vector<4x4x8xf32>
    %314 = vector.broadcast %312 : vector<1x1x8xf32> to vector<4x4x8xf32>
    %315 = arith.mulf %313, %314 : vector<4x4x8xf32>
    %316 = arith.addf %310, %315 : vector<4x4x8xf32>
    %317 = vector.extract_strided_slice %304 {offsets = [0, 0, 2], sizes = [4, 4, 1], strides = [1, 1, 1]} : vector<4x4x4xf32> to vector<4x4x1xf32>
    %318 = vector.extract_strided_slice %2 {offsets = [50, 0, 0], sizes = [1, 1, 8], strides = [1, 1, 1]} : vector<64x1x8xf32> to vector<1x1x8xf32>
    %319 = vector.broadcast %317 : vector<4x4x1xf32> to vector<4x4x8xf32>
    %320 = vector.broadcast %318 : vector<1x1x8xf32> to vector<4x4x8xf32>
    %321 = arith.mulf %319, %320 : vector<4x4x8xf32>
    %322 = arith.addf %316, %321 : vector<4x4x8xf32>
    %323 = vector.extract_strided_slice %304 {offsets = [0, 0, 3], sizes = [4, 4, 1], strides = [1, 1, 1]} : vector<4x4x4xf32> to vector<4x4x1xf32>
    %324 = vector.extract_strided_slice %2 {offsets = [51, 0, 0], sizes = [1, 1, 8], strides = [1, 1, 1]} : vector<64x1x8xf32> to vector<1x1x8xf32>
    %325 = vector.broadcast %323 : vector<4x4x1xf32> to vector<4x4x8xf32>
    %326 = vector.broadcast %324 : vector<1x1x8xf32> to vector<4x4x8xf32>
    %327 = arith.mulf %325, %326 : vector<4x4x8xf32>
    %328 = arith.addf %322, %327 : vector<4x4x8xf32>
    %329 = vector.extract_strided_slice %1 {offsets = [3, 1, 0], sizes = [4, 4, 4], strides = [1, 1, 1]} : vector<7x7x4xf32> to vector<4x4x4xf32>
    %330 = vector.extract_strided_slice %329 {offsets = [0, 0, 0], sizes = [4, 4, 1], strides = [1, 1, 1]} : vector<4x4x4xf32> to vector<4x4x1xf32>
    %331 = vector.extract_strided_slice %2 {offsets = [52, 0, 0], sizes = [1, 1, 8], strides = [1, 1, 1]} : vector<64x1x8xf32> to vector<1x1x8xf32>
    %332 = vector.broadcast %330 : vector<4x4x1xf32> to vector<4x4x8xf32>
    %333 = vector.broadcast %331 : vector<1x1x8xf32> to vector<4x4x8xf32>
    %334 = arith.mulf %332, %333 : vector<4x4x8xf32>
    %335 = arith.addf %328, %334 : vector<4x4x8xf32>
    %336 = vector.extract_strided_slice %329 {offsets = [0, 0, 1], sizes = [4, 4, 1], strides = [1, 1, 1]} : vector<4x4x4xf32> to vector<4x4x1xf32>
    %337 = vector.extract_strided_slice %2 {offsets = [53, 0, 0], sizes = [1, 1, 8], strides = [1, 1, 1]} : vector<64x1x8xf32> to vector<1x1x8xf32>
    %338 = vector.broadcast %336 : vector<4x4x1xf32> to vector<4x4x8xf32>
    %339 = vector.broadcast %337 : vector<1x1x8xf32> to vector<4x4x8xf32>
    %340 = arith.mulf %338, %339 : vector<4x4x8xf32>
    %341 = arith.addf %335, %340 : vector<4x4x8xf32>
    %342 = vector.extract_strided_slice %329 {offsets = [0, 0, 2], sizes = [4, 4, 1], strides = [1, 1, 1]} : vector<4x4x4xf32> to vector<4x4x1xf32>
    %343 = vector.extract_strided_slice %2 {offsets = [54, 0, 0], sizes = [1, 1, 8], strides = [1, 1, 1]} : vector<64x1x8xf32> to vector<1x1x8xf32>
    %344 = vector.broadcast %342 : vector<4x4x1xf32> to vector<4x4x8xf32>
    %345 = vector.broadcast %343 : vector<1x1x8xf32> to vector<4x4x8xf32>
    %346 = arith.mulf %344, %345 : vector<4x4x8xf32>
    %347 = arith.addf %341, %346 : vector<4x4x8xf32>
    %348 = vector.extract_strided_slice %329 {offsets = [0, 0, 3], sizes = [4, 4, 1], strides = [1, 1, 1]} : vector<4x4x4xf32> to vector<4x4x1xf32>
    %349 = vector.extract_strided_slice %2 {offsets = [55, 0, 0], sizes = [1, 1, 8], strides = [1, 1, 1]} : vector<64x1x8xf32> to vector<1x1x8xf32>
    %350 = vector.broadcast %348 : vector<4x4x1xf32> to vector<4x4x8xf32>
    %351 = vector.broadcast %349 : vector<1x1x8xf32> to vector<4x4x8xf32>
    %352 = arith.mulf %350, %351 : vector<4x4x8xf32>
    %353 = arith.addf %347, %352 : vector<4x4x8xf32>
    %354 = vector.extract_strided_slice %1 {offsets = [3, 2, 0], sizes = [4, 4, 4], strides = [1, 1, 1]} : vector<7x7x4xf32> to vector<4x4x4xf32>
    %355 = vector.extract_strided_slice %354 {offsets = [0, 0, 0], sizes = [4, 4, 1], strides = [1, 1, 1]} : vector<4x4x4xf32> to vector<4x4x1xf32>
    %356 = vector.extract_strided_slice %2 {offsets = [56, 0, 0], sizes = [1, 1, 8], strides = [1, 1, 1]} : vector<64x1x8xf32> to vector<1x1x8xf32>
    %357 = vector.broadcast %355 : vector<4x4x1xf32> to vector<4x4x8xf32>
    %358 = vector.broadcast %356 : vector<1x1x8xf32> to vector<4x4x8xf32>
    %359 = arith.mulf %357, %358 : vector<4x4x8xf32>
    %360 = arith.addf %353, %359 : vector<4x4x8xf32>
    %361 = vector.extract_strided_slice %354 {offsets = [0, 0, 1], sizes = [4, 4, 1], strides = [1, 1, 1]} : vector<4x4x4xf32> to vector<4x4x1xf32>
    %362 = vector.extract_strided_slice %2 {offsets = [57, 0, 0], sizes = [1, 1, 8], strides = [1, 1, 1]} : vector<64x1x8xf32> to vector<1x1x8xf32>
    %363 = vector.broadcast %361 : vector<4x4x1xf32> to vector<4x4x8xf32>
    %364 = vector.broadcast %362 : vector<1x1x8xf32> to vector<4x4x8xf32>
    %365 = arith.mulf %363, %364 : vector<4x4x8xf32>
    %366 = arith.addf %360, %365 : vector<4x4x8xf32>
    %367 = vector.extract_strided_slice %354 {offsets = [0, 0, 2], sizes = [4, 4, 1], strides = [1, 1, 1]} : vector<4x4x4xf32> to vector<4x4x1xf32>
    %368 = vector.extract_strided_slice %2 {offsets = [58, 0, 0], sizes = [1, 1, 8], strides = [1, 1, 1]} : vector<64x1x8xf32> to vector<1x1x8xf32>
    %369 = vector.broadcast %367 : vector<4x4x1xf32> to vector<4x4x8xf32>
    %370 = vector.broadcast %368 : vector<1x1x8xf32> to vector<4x4x8xf32>
    %371 = arith.mulf %369, %370 : vector<4x4x8xf32>
    %372 = arith.addf %366, %371 : vector<4x4x8xf32>
    %373 = vector.extract_strided_slice %354 {offsets = [0, 0, 3], sizes = [4, 4, 1], strides = [1, 1, 1]} : vector<4x4x4xf32> to vector<4x4x1xf32>
    %374 = vector.extract_strided_slice %2 {offsets = [59, 0, 0], sizes = [1, 1, 8], strides = [1, 1, 1]} : vector<64x1x8xf32> to vector<1x1x8xf32>
    %375 = vector.broadcast %373 : vector<4x4x1xf32> to vector<4x4x8xf32>
    %376 = vector.broadcast %374 : vector<1x1x8xf32> to vector<4x4x8xf32>
    %377 = arith.mulf %375, %376 : vector<4x4x8xf32>
    %378 = arith.addf %372, %377 : vector<4x4x8xf32>
    %379 = vector.extract_strided_slice %1 {offsets = [3, 3, 0], sizes = [4, 4, 4], strides = [1, 1, 1]} : vector<7x7x4xf32> to vector<4x4x4xf32>
    %380 = vector.extract_strided_slice %379 {offsets = [0, 0, 0], sizes = [4, 4, 1], strides = [1, 1, 1]} : vector<4x4x4xf32> to vector<4x4x1xf32>
    %381 = vector.extract_strided_slice %2 {offsets = [60, 0, 0], sizes = [1, 1, 8], strides = [1, 1, 1]} : vector<64x1x8xf32> to vector<1x1x8xf32>
    %382 = vector.broadcast %380 : vector<4x4x1xf32> to vector<4x4x8xf32>
    %383 = vector.broadcast %381 : vector<1x1x8xf32> to vector<4x4x8xf32>
    %384 = arith.mulf %382, %383 : vector<4x4x8xf32>
    %385 = arith.addf %378, %384 : vector<4x4x8xf32>
    %386 = vector.extract_strided_slice %379 {offsets = [0, 0, 1], sizes = [4, 4, 1], strides = [1, 1, 1]} : vector<4x4x4xf32> to vector<4x4x1xf32>
    %387 = vector.extract_strided_slice %2 {offsets = [61, 0, 0], sizes = [1, 1, 8], strides = [1, 1, 1]} : vector<64x1x8xf32> to vector<1x1x8xf32>
    %388 = vector.broadcast %386 : vector<4x4x1xf32> to vector<4x4x8xf32>
    %389 = vector.broadcast %387 : vector<1x1x8xf32> to vector<4x4x8xf32>
    %390 = arith.mulf %388, %389 : vector<4x4x8xf32>
    %391 = arith.addf %385, %390 : vector<4x4x8xf32>
    %392 = vector.extract_strided_slice %379 {offsets = [0, 0, 2], sizes = [4, 4, 1], strides = [1, 1, 1]} : vector<4x4x4xf32> to vector<4x4x1xf32>
    %393 = vector.extract_strided_slice %2 {offsets = [62, 0, 0], sizes = [1, 1, 8], strides = [1, 1, 1]} : vector<64x1x8xf32> to vector<1x1x8xf32>
    %394 = vector.broadcast %392 : vector<4x4x1xf32> to vector<4x4x8xf32>
    %395 = vector.broadcast %393 : vector<1x1x8xf32> to vector<4x4x8xf32>
    %396 = arith.mulf %394, %395 : vector<4x4x8xf32>
    %397 = arith.addf %391, %396 : vector<4x4x8xf32>
    %398 = vector.extract_strided_slice %379 {offsets = [0, 0, 3], sizes = [4, 4, 1], strides = [1, 1, 1]} : vector<4x4x4xf32> to vector<4x4x1xf32>
    %399 = vector.extract_strided_slice %2 {offsets = [63, 0, 0], sizes = [1, 1, 8], strides = [1, 1, 1]} : vector<64x1x8xf32> to vector<1x1x8xf32>
    %400 = vector.broadcast %398 : vector<4x4x1xf32> to vector<4x4x8xf32>
    %401 = vector.broadcast %399 : vector<1x1x8xf32> to vector<4x4x8xf32>
    %402 = arith.mulf %400, %401 : vector<4x4x8xf32>
    %403 = arith.addf %397, %402 : vector<4x4x8xf32>
    %c0_6 = arith.constant 0 : index
    %c0_7 = arith.constant 0 : index
    %c0_8 = arith.constant 0 : index
    %c0_9 = arith.constant 0 : index
    %404 = vector.load %arg2[%c0_6, %c0_7, %c0_8, %c0_9] : memref<1x1x1x8xf32, #tpu.memory_space<vmem>>, vector<1x1x1x8xf32>
    %405 = vector.shape_cast %404 : vector<1x1x1x8xf32> to vector<1x1x8xf32>
    %406 = vector.broadcast %405 : vector<1x1x8xf32> to vector<4x4x8xf32>
    %407 = arith.addf %403, %406 : vector<4x4x8xf32>
    %c0_10 = arith.constant 0 : index
    %c0_11 = arith.constant 0 : index
    %c0_12 = arith.constant 0 : index
    %c0_13 = arith.constant 0 : index
    %408 = vector.load %arg4[%c0_10, %c0_11, %c0_12, %c0_13] : memref<1x4x4x8xf32, #tpu.memory_space<vmem>>, vector<1x4x4x8xf32>
    %409 = vector.shape_cast %408 : vector<1x4x4x8xf32> to vector<4x4x8xf32>
    %410 = vector.shape_cast %407 : vector<4x4x8xf32> to vector<1x4x4x8xf32>
    tpu.vector_store %arg4[%c0_10, %c0_11, %c0_12, %c0_13], %410 {strides = array<i32>} : memref<1x4x4x8xf32, #tpu.memory_space<vmem>>, vector<1x4x4x8xf32>,
    %cst_14 = arith.constant dense<0.000000e+00> : vector<4x8xf32>
    %411 = vector.multi_reduction <add>, %407, %cst_14 [0] : vector<4x4x8xf32> to vector<4x8xf32>
    %412 = vector.shape_cast %411 : vector<4x8xf32> to vector<1x4x8xf32>
    %cst_15 = arith.constant dense<0.000000e+00> : vector<1x8xf32>
    %413 = vector.multi_reduction <add>, %412, %cst_15 [1] : vector<1x4x8xf32> to vector<1x8xf32>
    %414 = vector.shape_cast %413 : vector<1x8xf32> to vector<1x1x8xf32>
    %415 = arith.mulf %407, %407 : vector<4x4x8xf32>
    %cst_16 = arith.constant dense<0.000000e+00> : vector<4x8xf32>
    %416 = vector.multi_reduction <add>, %415, %cst_16 [0] : vector<4x4x8xf32> to vector<4x8xf32>
    %417 = vector.shape_cast %416 : vector<4x8xf32> to vector<1x4x8xf32>
    %cst_17 = arith.constant dense<0.000000e+00> : vector<1x8xf32>
    %418 = vector.multi_reduction <add>, %417, %cst_17 [1] : vector<1x4x8xf32> to vector<1x8xf32>
    %419 = vector.shape_cast %418 : vector<1x8xf32> to vector<1x1x8xf32>
    %c0_18 = arith.constant 0 : index
    %c0_19 = arith.constant 0 : index
    %c0_20 = arith.constant 0 : index
    %c0_21 = arith.constant 0 : index
    %420 = vector.load %arg5[%c0_18, %c0_19, %c0_20, %c0_21] : memref<1x1x1x8xf32, #tpu.memory_space<vmem>>, vector<1x1x1x8xf32>
    %421 = vector.shape_cast %420 : vector<1x1x1x8xf32> to vector<1x1x8xf32>
    %422 = vector.shape_cast %414 : vector<1x1x8xf32> to vector<1x1x1x8xf32>
    tpu.vector_store %arg5[%c0_18, %c0_19, %c0_20, %c0_21], %422 {strides = array<i32>} : memref<1x1x1x8xf32, #tpu.memory_space<vmem>>, vector<1x1x1x8xf32>,
    %c0_22 = arith.constant 0 : index
    %c0_23 = arith.constant 0 : index
    %c0_24 = arith.constant 0 : index
    %c0_25 = arith.constant 0 : index
    %423 = vector.load %arg6[%c0_22, %c0_23, %c0_24, %c0_25] : memref<1x1x1x8xf32, #tpu.memory_space<vmem>>, vector<1x1x1x8xf32>
    %424 = vector.shape_cast %423 : vector<1x1x1x8xf32> to vector<1x1x8xf32>
    %425 = vector.shape_cast %419 : vector<1x1x8xf32> to vector<1x1x1x8xf32>
    tpu.vector_store %arg6[%c0_22, %c0_23, %c0_24, %c0_25], %425 {strides = array<i32>} : memref<1x1x1x8xf32, #tpu.memory_space<vmem>>, vector<1x1x1x8xf32>,
    return
  }
  func.func @transform_0(%arg0: i32) -> (i32, i32, i32, i32) {
    %c0_i32 = arith.constant 0 : i32
    %c0_i32_0 = arith.constant 0 : i32
    %c0_i32_1 = arith.constant 0 : i32
    %c0_i32_2 = arith.constant 0 : i32
    return %arg0, %c0_i32, %c0_i32_0, %c0_i32_1 : i32, i32, i32, i32
  }
  func.func @transform_1(%arg0: i32) -> (i32, i32, i32, i32) {
    %c0_i32 = arith.constant 0 : i32
    %c0_i32_0 = arith.constant 0 : i32
    %c0_i32_1 = arith.constant 0 : i32
    %c0_i32_2 = arith.constant 0 : i32
    return %arg0, %c0_i32, %c0_i32_0, %c0_i32_1 : i32, i32, i32, i32
  }
  func.func @transform_2(%arg0: i32) -> (i32, i32, i32) {
    %c0_i32 = arith.constant 0 : i32
    %c0_i32_0 = arith.constant 0 : i32
    %c0_i32_1 = arith.constant 0 : i32
    %c0_i32_2 = arith.constant 0 : i32
    return %c0_i32, %c0_i32_0, %c0_i32_1 : i32, i32, i32
  }
  func.func @transform_3(%arg0: i32) -> (i32, i32, i32, i32) {
    %c0_i32 = arith.constant 0 : i32
    %c0_i32_0 = arith.constant 0 : i32
    %c0_i32_1 = arith.constant 0 : i32
    %c0_i32_2 = arith.constant 0 : i32
    return %arg0, %c0_i32, %c0_i32_0, %c0_i32_1 : i32, i32, i32, i32
  }
  func.func @transform_4(%arg0: i32) -> (i32, i32, i32, i32) {
    %c0_i32 = arith.constant 0 : i32
    %c0_i32_0 = arith.constant 0 : i32
    %c0_i32_1 = arith.constant 0 : i32
    %c0_i32_2 = arith.constant 0 : i32
    return %arg0, %c0_i32, %c0_i32_0, %c0_i32_1 : i32, i32, i32, i32
  }
  func.func @transform_5(%arg0: i32) -> (i32, i32, i32, i32) {
    %c0_i32 = arith.constant 0 : i32
    %c0_i32_0 = arith.constant 0 : i32
    %c0_i32_1 = arith.constant 0 : i32
    %c0_i32_2 = arith.constant 0 : i32
    return %arg0, %c0_i32, %c0_i32_0, %c0_i32_1 : i32, i32, i32, i32
  }
}

module attributes {stable_mosaic.version = 11 : i64} {
  func.func @bn_lrelu_conv2_kernel(%arg0: i32, %arg1: memref<1x4x4x8xf32, #tpu.memory_space<vmem>>, %arg2: memref<1x1x8xf32, #tpu.memory_space<vmem>>, %arg3: memref<1x1x8xf32, #tpu.memory_space<vmem>>, %arg4: memref<16x1x8xf32, #tpu.memory_space<vmem>>, %arg5: memref<1x1xf32, #tpu.memory_space<vmem>>, %arg6: memref<1x1x1xf32, #tpu.memory_space<vmem>>) attributes {dimension_semantics = [#tpu.dimension_semantics<parallel>], iteration_bounds = array<i64: 2>, scalar_prefetch = 0 : i64, scratch_operands = 0 : i64, tpu.core_type = #tpu.core_type<tc>, window_params = [{transform_indices = @transform_0, window_bounds = array<i64: 1, 4, 4, 8>}, {pipeline_mode = #tpu.pipeline_mode<synchronous>, transform_indices = @transform_1, window_bounds = array<i64: 1, 1, 8>}, {pipeline_mode = #tpu.pipeline_mode<synchronous>, transform_indices = @transform_2, window_bounds = array<i64: 1, 1, 8>}, {pipeline_mode = #tpu.pipeline_mode<synchronous>, transform_indices = @transform_3, window_bounds = array<i64: 16, 1, 8>}, {pipeline_mode = #tpu.pipeline_mode<synchronous>, transform_indices = @transform_4, window_bounds = array<i64: 1, 1>}, {transform_indices = @transform_5, window_bounds = array<i64: 1, 1, 1>}]} {
    %c0 = arith.constant 0 : index
    %c0_0 = arith.constant 0 : index
    %c0_1 = arith.constant 0 : index
    %c0_2 = arith.constant 0 : index
    %0 = vector.load %arg1[%c0, %c0_0, %c0_1, %c0_2] : memref<1x4x4x8xf32, #tpu.memory_space<vmem>>, vector<1x4x4x8xf32>
    %1 = vector.shape_cast %0 : vector<1x4x4x8xf32> to vector<4x4x8xf32>
    %c0_3 = arith.constant 0 : index
    %c0_4 = arith.constant 0 : index
    %c0_5 = arith.constant 0 : index
    %2 = vector.load %arg2[%c0_3, %c0_4, %c0_5] : memref<1x1x8xf32, #tpu.memory_space<vmem>>, vector<1x1x8xf32>
    %3 = vector.broadcast %2 : vector<1x1x8xf32> to vector<4x4x8xf32>
    %4 = arith.mulf %1, %3 : vector<4x4x8xf32>
    %c0_6 = arith.constant 0 : index
    %c0_7 = arith.constant 0 : index
    %c0_8 = arith.constant 0 : index
    %5 = vector.load %arg3[%c0_6, %c0_7, %c0_8] : memref<1x1x8xf32, #tpu.memory_space<vmem>>, vector<1x1x8xf32>
    %6 = vector.broadcast %5 : vector<1x1x8xf32> to vector<4x4x8xf32>
    %7 = arith.addf %4, %6 : vector<4x4x8xf32>
    %cst = arith.constant 0.000000e+00 : f32
    %8 = vector.broadcast %cst : f32 to vector<4x4x8xf32>
    %9 = arith.cmpf ogt, %7, %8 : vector<4x4x8xf32>
    %cst_9 = arith.constant 2.000000e-01 : f32
    %10 = vector.broadcast %cst_9 : f32 to vector<4x4x8xf32>
    %11 = arith.mulf %10, %7 : vector<4x4x8xf32>
    %12 = arith.select %9, %7, %11 : vector<4x4x8xi1>, vector<4x4x8xf32>
    %c0_10 = arith.constant 0 : index
    %c0_11 = arith.constant 0 : index
    %c0_12 = arith.constant 0 : index
    %13 = vector.load %arg4[%c0_10, %c0_11, %c0_12] : memref<16x1x8xf32, #tpu.memory_space<vmem>>, vector<16x1x8xf32>
    %cst_13 = arith.constant 0.000000e+00 : f32
    %14 = vector.broadcast %cst_13 : f32 to vector<1x1xf32>
    %15 = vector.extract_strided_slice %12 {offsets = [0, 0, 0], sizes = [1, 1, 8], strides = [1, 1, 1]} : vector<4x4x8xf32> to vector<1x1x8xf32>
    %16 = vector.extract_strided_slice %13 {offsets = [0, 0, 0], sizes = [1, 1, 8], strides = [1, 1, 1]} : vector<16x1x8xf32> to vector<1x1x8xf32>
    %17 = arith.mulf %15, %16 : vector<1x1x8xf32>
    %cst_14 = arith.constant dense<0.000000e+00> : vector<1x1xf32>
    %18 = vector.multi_reduction <add>, %17, %cst_14 [2] : vector<1x1x8xf32> to vector<1x1xf32>
    %19 = arith.addf %14, %18 : vector<1x1xf32>
    %20 = vector.extract_strided_slice %12 {offsets = [0, 1, 0], sizes = [1, 1, 8], strides = [1, 1, 1]} : vector<4x4x8xf32> to vector<1x1x8xf32>
    %21 = vector.extract_strided_slice %13 {offsets = [1, 0, 0], sizes = [1, 1, 8], strides = [1, 1, 1]} : vector<16x1x8xf32> to vector<1x1x8xf32>
    %22 = arith.mulf %20, %21 : vector<1x1x8xf32>
    %cst_15 = arith.constant dense<0.000000e+00> : vector<1x1xf32>
    %23 = vector.multi_reduction <add>, %22, %cst_15 [2] : vector<1x1x8xf32> to vector<1x1xf32>
    %24 = arith.addf %19, %23 : vector<1x1xf32>
    %25 = vector.extract_strided_slice %12 {offsets = [0, 2, 0], sizes = [1, 1, 8], strides = [1, 1, 1]} : vector<4x4x8xf32> to vector<1x1x8xf32>
    %26 = vector.extract_strided_slice %13 {offsets = [2, 0, 0], sizes = [1, 1, 8], strides = [1, 1, 1]} : vector<16x1x8xf32> to vector<1x1x8xf32>
    %27 = arith.mulf %25, %26 : vector<1x1x8xf32>
    %cst_16 = arith.constant dense<0.000000e+00> : vector<1x1xf32>
    %28 = vector.multi_reduction <add>, %27, %cst_16 [2] : vector<1x1x8xf32> to vector<1x1xf32>
    %29 = arith.addf %24, %28 : vector<1x1xf32>
    %30 = vector.extract_strided_slice %12 {offsets = [0, 3, 0], sizes = [1, 1, 8], strides = [1, 1, 1]} : vector<4x4x8xf32> to vector<1x1x8xf32>
    %31 = vector.extract_strided_slice %13 {offsets = [3, 0, 0], sizes = [1, 1, 8], strides = [1, 1, 1]} : vector<16x1x8xf32> to vector<1x1x8xf32>
    %32 = arith.mulf %30, %31 : vector<1x1x8xf32>
    %cst_17 = arith.constant dense<0.000000e+00> : vector<1x1xf32>
    %33 = vector.multi_reduction <add>, %32, %cst_17 [2] : vector<1x1x8xf32> to vector<1x1xf32>
    %34 = arith.addf %29, %33 : vector<1x1xf32>
    %35 = vector.extract_strided_slice %12 {offsets = [1, 0, 0], sizes = [1, 1, 8], strides = [1, 1, 1]} : vector<4x4x8xf32> to vector<1x1x8xf32>
    %36 = vector.extract_strided_slice %13 {offsets = [4, 0, 0], sizes = [1, 1, 8], strides = [1, 1, 1]} : vector<16x1x8xf32> to vector<1x1x8xf32>
    %37 = arith.mulf %35, %36 : vector<1x1x8xf32>
    %cst_18 = arith.constant dense<0.000000e+00> : vector<1x1xf32>
    %38 = vector.multi_reduction <add>, %37, %cst_18 [2] : vector<1x1x8xf32> to vector<1x1xf32>
    %39 = arith.addf %34, %38 : vector<1x1xf32>
    %40 = vector.extract_strided_slice %12 {offsets = [1, 1, 0], sizes = [1, 1, 8], strides = [1, 1, 1]} : vector<4x4x8xf32> to vector<1x1x8xf32>
    %41 = vector.extract_strided_slice %13 {offsets = [5, 0, 0], sizes = [1, 1, 8], strides = [1, 1, 1]} : vector<16x1x8xf32> to vector<1x1x8xf32>
    %42 = arith.mulf %40, %41 : vector<1x1x8xf32>
    %cst_19 = arith.constant dense<0.000000e+00> : vector<1x1xf32>
    %43 = vector.multi_reduction <add>, %42, %cst_19 [2] : vector<1x1x8xf32> to vector<1x1xf32>
    %44 = arith.addf %39, %43 : vector<1x1xf32>
    %45 = vector.extract_strided_slice %12 {offsets = [1, 2, 0], sizes = [1, 1, 8], strides = [1, 1, 1]} : vector<4x4x8xf32> to vector<1x1x8xf32>
    %46 = vector.extract_strided_slice %13 {offsets = [6, 0, 0], sizes = [1, 1, 8], strides = [1, 1, 1]} : vector<16x1x8xf32> to vector<1x1x8xf32>
    %47 = arith.mulf %45, %46 : vector<1x1x8xf32>
    %cst_20 = arith.constant dense<0.000000e+00> : vector<1x1xf32>
    %48 = vector.multi_reduction <add>, %47, %cst_20 [2] : vector<1x1x8xf32> to vector<1x1xf32>
    %49 = arith.addf %44, %48 : vector<1x1xf32>
    %50 = vector.extract_strided_slice %12 {offsets = [1, 3, 0], sizes = [1, 1, 8], strides = [1, 1, 1]} : vector<4x4x8xf32> to vector<1x1x8xf32>
    %51 = vector.extract_strided_slice %13 {offsets = [7, 0, 0], sizes = [1, 1, 8], strides = [1, 1, 1]} : vector<16x1x8xf32> to vector<1x1x8xf32>
    %52 = arith.mulf %50, %51 : vector<1x1x8xf32>
    %cst_21 = arith.constant dense<0.000000e+00> : vector<1x1xf32>
    %53 = vector.multi_reduction <add>, %52, %cst_21 [2] : vector<1x1x8xf32> to vector<1x1xf32>
    %54 = arith.addf %49, %53 : vector<1x1xf32>
    %55 = vector.extract_strided_slice %12 {offsets = [2, 0, 0], sizes = [1, 1, 8], strides = [1, 1, 1]} : vector<4x4x8xf32> to vector<1x1x8xf32>
    %56 = vector.extract_strided_slice %13 {offsets = [8, 0, 0], sizes = [1, 1, 8], strides = [1, 1, 1]} : vector<16x1x8xf32> to vector<1x1x8xf32>
    %57 = arith.mulf %55, %56 : vector<1x1x8xf32>
    %cst_22 = arith.constant dense<0.000000e+00> : vector<1x1xf32>
    %58 = vector.multi_reduction <add>, %57, %cst_22 [2] : vector<1x1x8xf32> to vector<1x1xf32>
    %59 = arith.addf %54, %58 : vector<1x1xf32>
    %60 = vector.extract_strided_slice %12 {offsets = [2, 1, 0], sizes = [1, 1, 8], strides = [1, 1, 1]} : vector<4x4x8xf32> to vector<1x1x8xf32>
    %61 = vector.extract_strided_slice %13 {offsets = [9, 0, 0], sizes = [1, 1, 8], strides = [1, 1, 1]} : vector<16x1x8xf32> to vector<1x1x8xf32>
    %62 = arith.mulf %60, %61 : vector<1x1x8xf32>
    %cst_23 = arith.constant dense<0.000000e+00> : vector<1x1xf32>
    %63 = vector.multi_reduction <add>, %62, %cst_23 [2] : vector<1x1x8xf32> to vector<1x1xf32>
    %64 = arith.addf %59, %63 : vector<1x1xf32>
    %65 = vector.extract_strided_slice %12 {offsets = [2, 2, 0], sizes = [1, 1, 8], strides = [1, 1, 1]} : vector<4x4x8xf32> to vector<1x1x8xf32>
    %66 = vector.extract_strided_slice %13 {offsets = [10, 0, 0], sizes = [1, 1, 8], strides = [1, 1, 1]} : vector<16x1x8xf32> to vector<1x1x8xf32>
    %67 = arith.mulf %65, %66 : vector<1x1x8xf32>
    %cst_24 = arith.constant dense<0.000000e+00> : vector<1x1xf32>
    %68 = vector.multi_reduction <add>, %67, %cst_24 [2] : vector<1x1x8xf32> to vector<1x1xf32>
    %69 = arith.addf %64, %68 : vector<1x1xf32>
    %70 = vector.extract_strided_slice %12 {offsets = [2, 3, 0], sizes = [1, 1, 8], strides = [1, 1, 1]} : vector<4x4x8xf32> to vector<1x1x8xf32>
    %71 = vector.extract_strided_slice %13 {offsets = [11, 0, 0], sizes = [1, 1, 8], strides = [1, 1, 1]} : vector<16x1x8xf32> to vector<1x1x8xf32>
    %72 = arith.mulf %70, %71 : vector<1x1x8xf32>
    %cst_25 = arith.constant dense<0.000000e+00> : vector<1x1xf32>
    %73 = vector.multi_reduction <add>, %72, %cst_25 [2] : vector<1x1x8xf32> to vector<1x1xf32>
    %74 = arith.addf %69, %73 : vector<1x1xf32>
    %75 = vector.extract_strided_slice %12 {offsets = [3, 0, 0], sizes = [1, 1, 8], strides = [1, 1, 1]} : vector<4x4x8xf32> to vector<1x1x8xf32>
    %76 = vector.extract_strided_slice %13 {offsets = [12, 0, 0], sizes = [1, 1, 8], strides = [1, 1, 1]} : vector<16x1x8xf32> to vector<1x1x8xf32>
    %77 = arith.mulf %75, %76 : vector<1x1x8xf32>
    %cst_26 = arith.constant dense<0.000000e+00> : vector<1x1xf32>
    %78 = vector.multi_reduction <add>, %77, %cst_26 [2] : vector<1x1x8xf32> to vector<1x1xf32>
    %79 = arith.addf %74, %78 : vector<1x1xf32>
    %80 = vector.extract_strided_slice %12 {offsets = [3, 1, 0], sizes = [1, 1, 8], strides = [1, 1, 1]} : vector<4x4x8xf32> to vector<1x1x8xf32>
    %81 = vector.extract_strided_slice %13 {offsets = [13, 0, 0], sizes = [1, 1, 8], strides = [1, 1, 1]} : vector<16x1x8xf32> to vector<1x1x8xf32>
    %82 = arith.mulf %80, %81 : vector<1x1x8xf32>
    %cst_27 = arith.constant dense<0.000000e+00> : vector<1x1xf32>
    %83 = vector.multi_reduction <add>, %82, %cst_27 [2] : vector<1x1x8xf32> to vector<1x1xf32>
    %84 = arith.addf %79, %83 : vector<1x1xf32>
    %85 = vector.extract_strided_slice %12 {offsets = [3, 2, 0], sizes = [1, 1, 8], strides = [1, 1, 1]} : vector<4x4x8xf32> to vector<1x1x8xf32>
    %86 = vector.extract_strided_slice %13 {offsets = [14, 0, 0], sizes = [1, 1, 8], strides = [1, 1, 1]} : vector<16x1x8xf32> to vector<1x1x8xf32>
    %87 = arith.mulf %85, %86 : vector<1x1x8xf32>
    %cst_28 = arith.constant dense<0.000000e+00> : vector<1x1xf32>
    %88 = vector.multi_reduction <add>, %87, %cst_28 [2] : vector<1x1x8xf32> to vector<1x1xf32>
    %89 = arith.addf %84, %88 : vector<1x1xf32>
    %90 = vector.extract_strided_slice %12 {offsets = [3, 3, 0], sizes = [1, 1, 8], strides = [1, 1, 1]} : vector<4x4x8xf32> to vector<1x1x8xf32>
    %91 = vector.extract_strided_slice %13 {offsets = [15, 0, 0], sizes = [1, 1, 8], strides = [1, 1, 1]} : vector<16x1x8xf32> to vector<1x1x8xf32>
    %92 = arith.mulf %90, %91 : vector<1x1x8xf32>
    %cst_29 = arith.constant dense<0.000000e+00> : vector<1x1xf32>
    %93 = vector.multi_reduction <add>, %92, %cst_29 [2] : vector<1x1x8xf32> to vector<1x1xf32>
    %94 = arith.addf %89, %93 : vector<1x1xf32>
    %c0_30 = arith.constant 0 : index
    %c0_31 = arith.constant 0 : index
    %95 = vector.load %arg5[%c0_30, %c0_31] : memref<1x1xf32, #tpu.memory_space<vmem>>, vector<1x1xf32>
    %96 = arith.addf %94, %95 : vector<1x1xf32>
    %c0_32 = arith.constant 0 : index
    %c0_33 = arith.constant 0 : index
    %c0_34 = arith.constant 0 : index
    %97 = vector.load %arg6[%c0_32, %c0_33, %c0_34] : memref<1x1x1xf32, #tpu.memory_space<vmem>>, vector<1x1x1xf32>
    %98 = vector.shape_cast %97 : vector<1x1x1xf32> to vector<1x1xf32>
    %99 = vector.shape_cast %96 : vector<1x1xf32> to vector<1x1x1xf32>
    tpu.vector_store %arg6[%c0_32, %c0_33, %c0_34], %99 {strides = array<i32>} : memref<1x1x1xf32, #tpu.memory_space<vmem>>, vector<1x1x1xf32>,
    return
  }
  func.func @transform_0(%arg0: i32) -> (i32, i32, i32, i32) {
    %c0_i32 = arith.constant 0 : i32
    %c0_i32_0 = arith.constant 0 : i32
    %c0_i32_1 = arith.constant 0 : i32
    %c0_i32_2 = arith.constant 0 : i32
    return %arg0, %c0_i32, %c0_i32_0, %c0_i32_1 : i32, i32, i32, i32
  }
  func.func @transform_1(%arg0: i32) -> (i32, i32, i32) {
    %c0_i32 = arith.constant 0 : i32
    %c0_i32_0 = arith.constant 0 : i32
    %c0_i32_1 = arith.constant 0 : i32
    %c0_i32_2 = arith.constant 0 : i32
    return %c0_i32, %c0_i32_0, %c0_i32_1 : i32, i32, i32
  }
  func.func @transform_2(%arg0: i32) -> (i32, i32, i32) {
    %c0_i32 = arith.constant 0 : i32
    %c0_i32_0 = arith.constant 0 : i32
    %c0_i32_1 = arith.constant 0 : i32
    %c0_i32_2 = arith.constant 0 : i32
    return %c0_i32, %c0_i32_0, %c0_i32_1 : i32, i32, i32
  }
  func.func @transform_3(%arg0: i32) -> (i32, i32, i32) {
    %c0_i32 = arith.constant 0 : i32
    %c0_i32_0 = arith.constant 0 : i32
    %c0_i32_1 = arith.constant 0 : i32
    %c0_i32_2 = arith.constant 0 : i32
    return %c0_i32, %c0_i32_0, %c0_i32_1 : i32, i32, i32
  }
  func.func @transform_4(%arg0: i32) -> (i32, i32) {
    %c0_i32 = arith.constant 0 : i32
    %c0_i32_0 = arith.constant 0 : i32
    %c0_i32_1 = arith.constant 0 : i32
    return %c0_i32, %c0_i32_0 : i32, i32
  }
  func.func @transform_5(%arg0: i32) -> (i32, i32, i32) {
    %c0_i32 = arith.constant 0 : i32
    %c0_i32_0 = arith.constant 0 : i32
    %c0_i32_1 = arith.constant 0 : i32
    return %arg0, %c0_i32, %c0_i32_0 : i32, i32, i32
  }
}

</mosaic_0001>

<llo_original>
// kernel: cond_discriminator_forward.3
$region0: #{cond_discriminator_forward.3}
  #allocation0 [shape = 'u32[]', space=smem, size = 0x4, offset = 0x4, fixed_abs, tag = 'smem constant byte address 0x4 - core index']
  #allocation1 [shape = 'u32[72,128]{1,0:T(1,128)}', space=vmem, size = 0x9000, scoped, tag = 'internal scratch']
  #allocation2 [shape = 'f32[1,1]{1,0:T(1,128)S(1)}', space=vmem, size = 0x200, scoped, tag = 'scoped memory for cond_discriminator_forward.3']
  %s0 = inlined_call_operand.vmem [shape: f32[2,4,4,8], index: 0, kind: input, shape index: {}]
  %s1 = inlined_call_operand.vmem [shape: f32[1,1,8], index: 1, kind: input, shape index: {}]
  %s2 = inlined_call_operand.vmem [shape: f32[1,1,8], index: 2, kind: input, shape index: {}]
  %s3 = inlined_call_operand.vmem [shape: f32[16,1,8], index: 3, kind: input, shape index: {}]
  %s4 = inlined_call_operand.<no memory space> [shape: f32[1,1], index: 4, kind: input, shape index: {}]
  %s5 = inlined_call_operand.vmem [shape: f32[2,1,1], index: 5, kind: output, shape index: {}]
  %s6 = sld [smem:[#allocation0]]
  $region53: #{cond_discriminator_forward.3} parent=0
    _
  %s8 = ssub.s32 1, %s6
  %s9 = scalar_select 0, %s8, %s6
  %v10 = vstv %s4
  %11 = vst [vmem:[#allocation2] sm:$0x1] %v10
  loop: start=0, step=1, limit=4
  $region2: #{cond_discriminator_forward.3} parent=0 // loop_pre_header
    _
  $region3: #{cond_discriminator_forward.3} parent=0 // loop_header
    %s13 = sphi 0, %s17
    %p14 = scmp.ge.s32.totalorder %s13, 4
    %s23 = sphi 0, %s25
    %s26 = sphi 0, %s23
    %s27 = sphi 0, %s26
    %s43 = sphi 0, %s27
    %s47 = sphi 0, %s47
    %s49 = sphi 0, %s47
    %s50 = sphi 0, %s49
    %s64 = sphi 0, %s50
    %s68 = sphi 0, %s68
    %s70 = sphi 0, %s68
    %s71 = sphi 0, %s70
    %s85 = sphi 0, %s71
    %s89 = sphi 0, %s89
    %s91 = sphi 0, %s89
    %s92 = sphi 0, %s91
    %s106 = sphi 0, %s92
    %s110 = sphi 0, %s110
    %s112 = sphi 0, %s110
    %s113 = sphi 0, %s112
    %s127 = sphi 0, %s113
    %s133 = sphi 0, %s135
    %s136 = sphi 0, %s133
    %s137 = sphi 0, %s136
    %s153 = sphi 0, %s137
  $region4: #{cond_discriminator_forward.3} parent=0 // loop_header_branch
    %16 = sbr.rel (%p14) target = $region8
  $region5: #{cond_discriminator_forward.3} parent=0 // loop_body
    %s18 = ssub.s32 %s13, 1
    %s19 = ssub.s32 %s13, 2
    %s20 = sadd.s32 %s13, 1
    %s21 = ssub.s32 %s13, %s20
    %p22 = scmp.eq.s32.totalorder %s21, 0
    %s24 = sadd.s32 %s23, 1
    %s25 = scalar_select %p22, %s23, %s24
    %p28 = pneg %p22
    %p29 = scmp.eq.s32.totalorder %s13, 1
    %p30 = por %p28, %p29
    %p31 = scmp.ne.s32.totalorder %s23, %s26
    %p32 = scmp.eq.s32.totalorder %s13, 0
    %p33 = por %p31, %p32
    %p34 = scmp.ne.s32.totalorder %s23, %s26
    %p35 = scmp.eq.s32.totalorder %s18, 1
    %p36 = por %p34, %p35
    %p37 = scmp.ne.s32.totalorder %s26, %s27
    %p38 = scmp.eq.s32.totalorder %s18, 0
    %p39 = por %p37, %p38
    %p40 = scmp.ne.s32.totalorder %s26, %s27
    %p41 = scmp.eq.s32.totalorder %s19, 1
    %p42 = por %p40, %p41
    %p44 = scmp.ne.s32.totalorder %s27, %s43
    %p45 = scmp.eq.s32.totalorder %s19, 0
    %p46 = por %p44, %p45
    %s48 = sadd.s32 %s47, 1
    %p51 = scmp.eq.s32.totalorder %s13, 1
    %p52 = scmp.ne.s32.totalorder %s47, %s49
    %p53 = scmp.eq.s32.totalorder %s13, 0
    %p54 = por %p52, %p53
    %p55 = scmp.ne.s32.totalorder %s47, %s49
    %p56 = scmp.eq.s32.totalorder %s18, 1
    %p57 = por %p55, %p56
    %p58 = scmp.ne.s32.totalorder %s49, %s50
    %p59 = scmp.eq.s32.totalorder %s18, 0
    %p60 = por %p58, %p59
    %p61 = scmp.ne.s32.totalorder %s49, %s50
    %p62 = scmp.eq.s32.totalorder %s19, 1
    %p63 = por %p61, %p62
    %p65 = scmp.ne.s32.totalorder %s50, %s64
    %p66 = scmp.eq.s32.totalorder %s19, 0
    %p67 = por %p65, %p66
    %s69 = sadd.s32 %s68, 1
    %p72 = scmp.eq.s32.totalorder %s13, 1
    %p73 = scmp.ne.s32.totalorder %s68, %s70
    %p74 = scmp.eq.s32.totalorder %s13, 0
    %p75 = por %p73, %p74
    %p76 = scmp.ne.s32.totalorder %s68, %s70
    %p77 = scmp.eq.s32.totalorder %s18, 1
    %p78 = por %p76, %p77
    %p79 = scmp.ne.s32.totalorder %s70, %s71
    %p80 = scmp.eq.s32.totalorder %s18, 0
    %p81 = por %p79, %p80
    %p82 = scmp.ne.s32.totalorder %s70, %s71
    %p83 = scmp.eq.s32.totalorder %s19, 1
    %p84 = por %p82, %p83
    %p86 = scmp.ne.s32.totalorder %s71, %s85
    %p87 = scmp.eq.s32.totalorder %s19, 0
    %p88 = por %p86, %p87
    %s90 = sadd.s32 %s89, 1
    %p93 = scmp.eq.s32.totalorder %s13, 1
    %p94 = scmp.ne.s32.totalorder %s89, %s91
    %p95 = scmp.eq.s32.totalorder %s13, 0
    %p96 = por %p94, %p95
    %p97 = scmp.ne.s32.totalorder %s89, %s91
    %p98 = scmp.eq.s32.totalorder %s18, 1
    %p99 = por %p97, %p98
    %p100 = scmp.ne.s32.totalorder %s91, %s92
    %p101 = scmp.eq.s32.totalorder %s18, 0
    %p102 = por %p100, %p101
    %p103 = scmp.ne.s32.totalorder %s91, %s92
    %p104 = scmp.eq.s32.totalorder %s19, 1
    %p105 = por %p103, %p104
    %p107 = scmp.ne.s32.totalorder %s92, %s106
    %p108 = scmp.eq.s32.totalorder %s19, 0
    %p109 = por %p107, %p108
    %s111 = sadd.s32 %s110, 1
    %p114 = scmp.eq.s32.totalorder %s13, 1
    %p115 = scmp.ne.s32.totalorder %s110, %s112
    %p116 = scmp.eq.s32.totalorder %s13, 0
    %p117 = por %p115, %p116
    %p118 = scmp.ne.s32.totalorder %s110, %s112
    %p119 = scmp.eq.s32.totalorder %s18, 1
    %p120 = por %p118, %p119
    %p121 = scmp.ne.s32.totalorder %s112, %s113
    %p122 = scmp.eq.s32.totalorder %s18, 0
    %p123 = por %p121, %p122
    %p124 = scmp.ne.s32.totalorder %s112, %s113
    %p125 = scmp.eq.s32.totalorder %s19, 1
    %p126 = por %p124, %p125
    %p128 = scmp.ne.s32.totalorder %s113, %s127
    %p129 = scmp.eq.s32.totalorder %s19, 0
    %p130 = por %p128, %p129
    %s131 = ssub.s32 %s13, %s20
    %p132 = scmp.eq.s32.totalorder %s131, 0
    %s134 = sadd.s32 %s133, 1
    %s135 = scalar_select %p132, %s133, %s134
    %p138 = pneg %p132
    %p139 = scmp.eq.s32.totalorder %s13, 1
    %p140 = por %p138, %p139
    %p141 = scmp.ne.s32.totalorder %s133, %s136
    %p142 = scmp.eq.s32.totalorder %s13, 0
    %p143 = por %p141, %p142
    %p144 = scmp.ne.s32.totalorder %s133, %s136
    %p145 = scmp.eq.s32.totalorder %s18, 1
    %p146 = por %p144, %p145
    %p147 = scmp.ne.s32.totalorder %s136, %s137
    %p148 = scmp.eq.s32.totalorder %s18, 0
    %p149 = por %p147, %p148
    %p150 = scmp.ne.s32.totalorder %s136, %s137
    %p151 = scmp.eq.s32.totalorder %s19, 1
    %p152 = por %p150, %p151
    %p154 = scmp.ne.s32.totalorder %s137, %s153
    %p155 = scmp.eq.s32.totalorder %s19, 0
    %p156 = por %p154, %p155
    %p157 = scmp.le.s32.totalorder 1, %s13
    %p158 = scmp.lt.s32.totalorder %s13, 3
    %p159 = pnand %p157, %p158
    %p160 = pneg %p159
    // Predicated region
    $region9: #{cond_discriminator_forward.3} parent=5 // pred_check
      _
    $region10: #{cond_discriminator_forward.3} parent=5 // pred_check_branch
      %162 = sbr.rel (%p159) target = $region12
    $region11: #{cond_discriminator_forward.3} parent=5 // pred_region
      %s163 = ssub.s32 %s13, 1
      // Predicated region
      $region13: #{cond_discriminator_forward.3} parent=11 // pred_check
        %p164 = pneg %p60
      $region14: #{cond_discriminator_forward.3} parent=11 // pred_check_branch
        %166 = sbr.rel (%p164) target = $region16
      $region15: #{cond_discriminator_forward.3} parent=11 // pred_region
        _
      $region16: #{cond_discriminator_forward.3} parent=11 // pred_fallthru
        _
      // Predicated region
      $region17: #{cond_discriminator_forward.3} parent=11 // pred_check
        %p167 = pneg %p81
      $region18: #{cond_discriminator_forward.3} parent=11 // pred_check_branch
        %169 = sbr.rel (%p167) target = $region20
      $region19: #{cond_discriminator_forward.3} parent=11 // pred_region
        _
      $region20: #{cond_discriminator_forward.3} parent=11 // pred_fallthru
        _
      // Predicated region
      $region21: #{cond_discriminator_forward.3} parent=11 // pred_check
        %p170 = pneg %p102
      $region22: #{cond_discriminator_forward.3} parent=11 // pred_check_branch
        %172 = sbr.rel (%p170) target = $region24
      $region23: #{cond_discriminator_forward.3} parent=11 // pred_region
        _
      $region24: #{cond_discriminator_forward.3} parent=11 // pred_fallthru
        _
      // Predicated region
      $region25: #{cond_discriminator_forward.3} parent=11 // pred_check
        %p173 = pneg %p123
      $region26: #{cond_discriminator_forward.3} parent=11 // pred_check_branch
        %175 = sbr.rel (%p173) target = $region28
      $region27: #{cond_discriminator_forward.3} parent=11 // pred_region
        _
      $region28: #{cond_discriminator_forward.3} parent=11 // pred_fallthru
        _
    $region12: #{cond_discriminator_forward.3} parent=5 // pred_fallthru
      _
    %p176 = scmp.lt.s32.totalorder %s13, 2
    // Predicated region
    $region29: #{cond_discriminator_forward.3} parent=5 // pred_check
      %p177 = pneg %p176
    $region30: #{cond_discriminator_forward.3} parent=5 // pred_check_branch
      %179 = sbr.rel (%p177) target = $region32
    $region31: #{cond_discriminator_forward.3} parent=5 // pred_region
      // Predicated region
      $region33: #{cond_discriminator_forward.3} parent=31 // pred_check
        %p180 = pneg %p33
      $region34: #{cond_discriminator_forward.3} parent=31 // pred_check_branch
        %182 = sbr.rel (%p180) target = $region36
      $region35: #{cond_discriminator_forward.3} parent=31 // pred_region
        %p183 = scmp.lt.s32.totalorder %s13, 1
        %s184 = scalar_select %p183, %s13, 1
        %s185 = smul.addr %s184, 4
        %s186 = smul.addr %s185, 4
        %s187 = scalar_lea.vmem %s0, %s186
      $region36: #{cond_discriminator_forward.3} parent=31 // pred_fallthru
        _
    $region32: #{cond_discriminator_forward.3} parent=5 // pred_fallthru
      _
    %p188 = scmp.le.s32.totalorder 1, %s13
    %p189 = scmp.lt.s32.totalorder %s13, 3
    %p190 = pnand %p188, %p189
    %p191 = pneg %p190
    // Predicated region
    $region37: #{cond_discriminator_forward.3} parent=5 // pred_check
      _
    $region38: #{cond_discriminator_forward.3} parent=5 // pred_check_branch
      %193 = sbr.rel (%p190) target = $region40
    $region39: #{cond_discriminator_forward.3} parent=5 // pred_region
      %s194 = ssub.s32 %s13, 1
      %p195 = scmp.lt.s32.totalorder %s18, 1
      %s196 = scalar_select %p195, %s18, 1
      %s197 = smul.addr %s196, 4
      %s198 = smul.addr %s197, 4
      %s199 = scalar_lea.vmem %s0, %s198
      %p200 = pneg %p39
      %p201 = pneg %p36
      %p202 = pneg %p60
      %p203 = pneg %p57
      %p204 = pneg %p81
      %p205 = pneg %p78
      %p206 = pneg %p102
      %p207 = pneg %p99
      %p208 = pneg %p123
      %p209 = pneg %p120
      %p210 = pneg %p149
      %p211 = pneg %p146
      %p212 = scmp.lt.s32.totalorder %s18, 1
      %s213 = scalar_select %p212, %s18, 1
      %s214 = scalar_lea.vmem %s5, %s213
      %p215 = scmp.lt.s32.totalorder %s18, 1
      %s216 = scalar_select %p215, %s18, 1
      %s217 = smul.addr %s216, 4
      %s218 = smul.addr %s217, 4
      %s219 = scalar_lea.vmem %s0, %s218
      %p220 = scmp.lt.s32.totalorder %s18, 1
      %s221 = scalar_select %p220, %s18, 1
      %s222 = scalar_lea.vmem %s5, %s221
      %v223 = vld [vmem:[%s219] sm:$0xf]
      %v224 = vld [vmem:[%s219 + $0x4] sm:$0xf]
      %v225 = vld [vmem:[%s219 + $0x8] sm:$0xf]
      %v226 = vld [vmem:[%s219 + $0xc] sm:$0xf]
      %v227 = vld [vmem:[%s1] sm:$0x1]
      %v229 = vperm.slane %v227, 0
      %v231 = vmul.f32 %v223, %v229
      %v232 = vmul.f32 %v224, %v229
      %v233 = vmul.f32 %v225, %v229
      %v234 = vmul.f32 %v226, %v229
      %v235 = vld [vmem:[%s2] sm:$0x1]
      %v237 = vperm.slane %v235, 0
      %v239 = vadd.f32 %v231, %v237
      %v240 = vadd.f32 %v232, %v237
      %v241 = vadd.f32 %v233, %v237
      %v242 = vadd.f32 %v234, %v237
      %vm243 = vcmp.gt.f32.partialorder %v239, 0.0
      %vm244 = vcmp.gt.f32.partialorder %v240, 0.0
      %vm245 = vcmp.gt.f32.partialorder %v241, 0.0
      %vm246 = vcmp.gt.f32.partialorder %v242, 0.0
      %v247 = vmul.f32 %v239, 0.2
      %v248 = vmul.f32 %v240, 0.2
      %v249 = vmul.f32 %v241, 0.2
      %v250 = vmul.f32 %v242, 0.2
      %v251 = vsel %vm243, %v239, %v247
      %v252 = vsel %vm244, %v240, %v248
      %v253 = vsel %vm245, %v241, %v249
      %v254 = vsel %vm246, %v242, %v250
      %v255 = vld [vmem:[%s3] sm:$0x1]
      %v256 = vld [vmem:[%s3 + $0x1] sm:$0x1]
      %v257 = vld [vmem:[%s3 + $0x2] sm:$0x1]
      %v258 = vld [vmem:[%s3 + $0x3] sm:$0x1]
      %v259 = vld [vmem:[%s3 + $0x4] sm:$0x1]
      %v260 = vld [vmem:[%s3 + $0x5] sm:$0x1]
      %v261 = vld [vmem:[%s3 + $0x6] sm:$0x1]
      %v262 = vld [vmem:[%s3 + $0x7] sm:$0x1]
      %v263 = vld [vmem:[%s3 + $0x8] sm:$0x1]
      %v264 = vld [vmem:[%s3 + $0x9] sm:$0x1]
      %v265 = vld [vmem:[%s3 + $0xa] sm:$0x1]
      %v266 = vld [vmem:[%s3 + $0xb] sm:$0x1]
      %v267 = vld [vmem:[%s3 + $0xc] sm:$0x1]
      %v268 = vld [vmem:[%s3 + $0xd] sm:$0x1]
      %v269 = vld [vmem:[%s3 + $0xe] sm:$0x1]
      %v270 = vld [vmem:[%s3 + $0xf] sm:$0x1]
      %v271 = vmul.f32 %v251, %v255
      %vm272 = vcmask 57344
      %v273 = vsel %vm272, %v271, 0.0
      %274 = vadd.xlane.f32.xlu0 %v273
      %v275 = vpop.xlane.xlu0 %274
      %v276 = vadd.f32 %v275, 0.0
      %v278 = vperm.slane %v256, 0
      %v280 = vmul.f32 %v251, %v278
      %vm281 = vcmask 58369
      %v282 = vsel %vm281, %v280, 0.0
      %283 = vadd.xlane.f32.xlu0 %v282
      %v284 = vpop.xlane.xlu0 %283
      %v286 = vrot.slane %v284, 1
      %v288 = vadd.f32 %v276, %v286
      %v290 = vperm.slane %v257, 0
      %v292 = vmul.f32 %v251, %v290
      %vm293 = vcmask 59394
      %v294 = vsel %vm293, %v292, 0.0
      %295 = vadd.xlane.f32.xlu0 %v294
      %v296 = vpop.xlane.xlu0 %295
      %v298 = vrot.slane %v296, 2
      %v300 = vadd.f32 %v288, %v298
      %v302 = vperm.slane %v258, 0
      %v304 = vmul.f32 %v251, %v302
      %vm305 = vcmask 60419
      %v306 = vsel %vm305, %v304, 0.0
      %307 = vadd.xlane.f32.xlu0 %v306
      %v308 = vpop.xlane.xlu0 %307
      %v310 = vrot.slane %v308, 3
      %v312 = vadd.f32 %v300, %v310
      %v313 = vmul.f32 %v252, %v259
      %v314 = vsel %vm272, %v313, 0.0
      %315 = vadd.xlane.f32.xlu0 %v314
      %v316 = vpop.xlane.xlu0 %315
      %v317 = vadd.f32 %v312, %v316
      %v319 = vperm.slane %v260, 0
      %v321 = vmul.f32 %v252, %v319
      %v322 = vsel %vm281, %v321, 0.0
      %323 = vadd.xlane.f32.xlu0 %v322
      %v324 = vpop.xlane.xlu0 %323
      %v326 = vrot.slane %v324, 1
      %v328 = vadd.f32 %v317, %v326
      %v330 = vperm.slane %v261, 0
      %v332 = vmul.f32 %v252, %v330
      %v333 = vsel %vm293, %v332, 0.0
      %334 = vadd.xlane.f32.xlu0 %v333
      %v335 = vpop.xlane.xlu0 %334
      %v337 = vrot.slane %v335, 2
      %v339 = vadd.f32 %v328, %v337
      %v341 = vperm.slane %v262, 0
      %v343 = vmul.f32 %v252, %v341
      %v344 = vsel %vm305, %v343, 0.0
      %345 = vadd.xlane.f32.xlu0 %v344
      %v346 = vpop.xlane.xlu0 %345
      %v348 = vrot.slane %v346, 3
      %v350 = vadd.f32 %v339, %v348
      %v351 = vmul.f32 %v253, %v263
      %v352 = vsel %vm272, %v351, 0.0
      %353 = vadd.xlane.f32.xlu0 %v352
      %v354 = vpop.xlane.xlu0 %353
      %v355 = vadd.f32 %v350, %v354
      %v357 = vperm.slane %v264, 0
      %v359 = vmul.f32 %v253, %v357
      %v360 = vsel %vm281, %v359, 0.0
      %361 = vadd.xlane.f32.xlu0 %v360
      %v362 = vpop.xlane.xlu0 %361
      %v364 = vrot.slane %v362, 1
      %v366 = vadd.f32 %v355, %v364
      %v368 = vperm.slane %v265, 0
      %v370 = vmul.f32 %v253, %v368
      %v371 = vsel %vm293, %v370, 0.0
      %372 = vadd.xlane.f32.xlu0 %v371
      %v373 = vpop.xlane.xlu0 %372
      %v375 = vrot.slane %v373, 2
      %v377 = vadd.f32 %v366, %v375
      %v379 = vperm.slane %v266, 0
      %v381 = vmul.f32 %v253, %v379
      %v382 = vsel %vm305, %v381, 0.0
      %383 = vadd.xlane.f32.xlu0 %v382
      %v384 = vpop.xlane.xlu0 %383
      %v386 = vrot.slane %v384, 3
      %v388 = vadd.f32 %v377, %v386
      %v389 = vmul.f32 %v254, %v267
      %v390 = vsel %vm272, %v389, 0.0
      %391 = vadd.xlane.f32.xlu0 %v390
      %v392 = vpop.xlane.xlu0 %391
      %v393 = vadd.f32 %v388, %v392
      %v395 = vperm.slane %v268, 0
      %v397 = vmul.f32 %v254, %v395
      %v398 = vsel %vm281, %v397, 0.0
      %399 = vadd.xlane.f32.xlu0 %v398
      %v400 = vpop.xlane.xlu0 %399
      %v402 = vrot.slane %v400, 1
      %v404 = vadd.f32 %v393, %v402
      %v406 = vperm.slane %v269, 0
      %v408 = vmul.f32 %v254, %v406
      %v409 = vsel %vm293, %v408, 0.0
      %410 = vadd.xlane.f32.xlu0 %v409
      %v411 = vpop.xlane.xlu0 %410
      %v413 = vrot.slane %v411, 2
      %v415 = vadd.f32 %v404, %v413
      %v417 = vperm.slane %v270, 0
      %v419 = vmul.f32 %v254, %v417
      %v420 = vsel %vm305, %v419, 0.0
      %421 = vadd.xlane.f32.xlu0 %v420
      %v422 = vpop.xlane.xlu0 %421
      %v424 = vrot.slane %v422, 3
      %v426 = vadd.f32 %v415, %v424
      %v427 = vld [vmem:[#allocation2] sm:$0x1]
      %v428 = vadd.f32 %v426, %v427
      %vm429 = vcmask 0
      %430 = vst.msk [vmem:[%s222] sm:$0x1] %vm429, %v428
      %p431 = scmp.lt.s32.totalorder %s18, 1
      %s432 = scalar_select %p431, %s18, 1
      %s433 = scalar_lea.vmem %s5, %s432
      // Predicated region
      $region41: #{cond_discriminator_forward.3} parent=39 // pred_check
        %p434 = pneg %p146
      $region42: #{cond_discriminator_forward.3} parent=39 // pred_check_branch
        %436 = sbr.rel (%p434) target = $region44
      $region43: #{cond_discriminator_forward.3} parent=39 // pred_region
        _
      $region44: #{cond_discriminator_forward.3} parent=39 // pred_fallthru
        _
    $region40: #{cond_discriminator_forward.3} parent=5 // pred_fallthru
      _
    %p437 = scmp.le.s32.totalorder 2, %s13
    // Predicated region
    $region45: #{cond_discriminator_forward.3} parent=5 // pred_check
      %p438 = pneg %p437
    $region46: #{cond_discriminator_forward.3} parent=5 // pred_check_branch
      %440 = sbr.rel (%p438) target = $region48
    $region47: #{cond_discriminator_forward.3} parent=5 // pred_region
      %s441 = ssub.s32 %s13, 2
      // Predicated region
      $region49: #{cond_discriminator_forward.3} parent=47 // pred_check
        %p442 = pneg %p152
      $region50: #{cond_discriminator_forward.3} parent=47 // pred_check_branch
        %444 = sbr.rel (%p442) target = $region52
      $region51: #{cond_discriminator_forward.3} parent=47 // pred_region
        %p445 = scmp.lt.s32.totalorder %s19, 1
        %s446 = scalar_select %p445, %s19, 1
        %s447 = scalar_lea.vmem %s5, %s446
      $region52: #{cond_discriminator_forward.3} parent=47 // pred_fallthru
        _
    $region48: #{cond_discriminator_forward.3} parent=5 // pred_fallthru
      _
  $region6: #{cond_discriminator_forward.3} parent=0 // loop_footer
    %s17 = sadd.s32 1, %s13
  $region7: #{cond_discriminator_forward.3} parent=0 // loop_footer_branch
    %12 = sbr.rel target = $region3
  $region8: #{cond_discriminator_forward.3} parent=0 // loop_exit
    _

// kernel: cond_discriminator_forward.2
$region0: #{cond_discriminator_forward.2}
  #allocation0 [shape = 'u32[]', space=smem, size = 0x4, offset = 0x4, fixed_abs, tag = 'smem constant byte address 0x4 - core index']
  #allocation1 [shape = 'u32[72,128]{1,0:T(1,128)}', space=vmem, size = 0x9000, scoped, tag = 'internal scratch']
  %s0 = inlined_call_operand.vmem [shape: f32[2,7,7,4], index: 0, kind: input, shape index: {}]
  %s1 = inlined_call_operand.vmem [shape: f32[2,1,1,8], index: 1, kind: input, shape index: {}]
  %s2 = inlined_call_operand.vmem [shape: f32[64,1,8], index: 2, kind: input, shape index: {}]
  %s3 = inlined_call_operand.vmem [shape: f32[2,4,4,8], index: 3, kind: output, shape index: {0}]
  %s4 = inlined_call_operand.vmem [shape: f32[2,1,1,8], index: 4, kind: output, shape index: {1}]
  %s5 = inlined_call_operand.vmem [shape: f32[2,1,1,8], index: 5, kind: output, shape index: {2}]
  %6 = xla_tuple %s3, %s4, %s5
  %s7 = sld [smem:[#allocation0]]
  $region61: #{cond_discriminator_forward.2} parent=0
    _
  %s9 = ssub.s32 1, %s7
  %s10 = scalar_select 0, %s9, %s7
  loop: start=0, step=1, limit=4
  $region2: #{cond_discriminator_forward.2} parent=0 // loop_pre_header
    _
  $region3: #{cond_discriminator_forward.2} parent=0 // loop_header
    %s12 = sphi 0, %s16
    %p13 = scmp.ge.s32.totalorder %s12, 4
    %s22 = sphi 0, %s24
    %s25 = sphi 0, %s22
    %s26 = sphi 0, %s25
    %s42 = sphi 0, %s26
    %s48 = sphi 0, %s50
    %s51 = sphi 0, %s48
    %s52 = sphi 0, %s51
    %s68 = sphi 0, %s52
    %s72 = sphi 0, %s72
    %s74 = sphi 0, %s72
    %s75 = sphi 0, %s74
    %s89 = sphi 0, %s75
    %s95 = sphi 0, %s97
    %s98 = sphi 0, %s95
    %s99 = sphi 0, %s98
    %s115 = sphi 0, %s99
    %s121 = sphi 0, %s123
    %s124 = sphi 0, %s121
    %s125 = sphi 0, %s124
    %s141 = sphi 0, %s125
    %s147 = sphi 0, %s149
    %s150 = sphi 0, %s147
    %s151 = sphi 0, %s150
    %s167 = sphi 0, %s151
  $region4: #{cond_discriminator_forward.2} parent=0 // loop_header_branch
    %15 = sbr.rel (%p13) target = $region8
  $region5: #{cond_discriminator_forward.2} parent=0 // loop_body
    %s17 = ssub.s32 %s12, 1
    %s18 = ssub.s32 %s12, 2
    %s19 = sadd.s32 %s12, 1
    %s20 = ssub.s32 %s12, %s19
    %p21 = scmp.eq.s32.totalorder %s20, 0
    %s23 = sadd.s32 %s22, 1
    %s24 = scalar_select %p21, %s22, %s23
    %p27 = pneg %p21
    %p28 = scmp.eq.s32.totalorder %s12, 1
    %p29 = por %p27, %p28
    %p30 = scmp.ne.s32.totalorder %s22, %s25
    %p31 = scmp.eq.s32.totalorder %s12, 0
    %p32 = por %p30, %p31
    %p33 = scmp.ne.s32.totalorder %s22, %s25
    %p34 = scmp.eq.s32.totalorder %s17, 1
    %p35 = por %p33, %p34
    %p36 = scmp.ne.s32.totalorder %s25, %s26
    %p37 = scmp.eq.s32.totalorder %s17, 0
    %p38 = por %p36, %p37
    %p39 = scmp.ne.s32.totalorder %s25, %s26
    %p40 = scmp.eq.s32.totalorder %s18, 1
    %p41 = por %p39, %p40
    %p43 = scmp.ne.s32.totalorder %s26, %s42
    %p44 = scmp.eq.s32.totalorder %s18, 0
    %p45 = por %p43, %p44
    %s46 = ssub.s32 %s12, %s19
    %p47 = scmp.eq.s32.totalorder %s46, 0
    %s49 = sadd.s32 %s48, 1
    %s50 = scalar_select %p47, %s48, %s49
    %p53 = pneg %p47
    %p54 = scmp.eq.s32.totalorder %s12, 1
    %p55 = por %p53, %p54
    %p56 = scmp.ne.s32.totalorder %s48, %s51
    %p57 = scmp.eq.s32.totalorder %s12, 0
    %p58 = por %p56, %p57
    %p59 = scmp.ne.s32.totalorder %s48, %s51
    %p60 = scmp.eq.s32.totalorder %s17, 1
    %p61 = por %p59, %p60
    %p62 = scmp.ne.s32.totalorder %s51, %s52
    %p63 = scmp.eq.s32.totalorder %s17, 0
    %p64 = por %p62, %p63
    %p65 = scmp.ne.s32.totalorder %s51, %s52
    %p66 = scmp.eq.s32.totalorder %s18, 1
    %p67 = por %p65, %p66
    %p69 = scmp.ne.s32.totalorder %s52, %s68
    %p70 = scmp.eq.s32.totalorder %s18, 0
    %p71 = por %p69, %p70
    %s73 = sadd.s32 %s72, 1
    %p76 = scmp.eq.s32.totalorder %s12, 1
    %p77 = scmp.ne.s32.totalorder %s72, %s74
    %p78 = scmp.eq.s32.totalorder %s12, 0
    %p79 = por %p77, %p78
    %p80 = scmp.ne.s32.totalorder %s72, %s74
    %p81 = scmp.eq.s32.totalorder %s17, 1
    %p82 = por %p80, %p81
    %p83 = scmp.ne.s32.totalorder %s74, %s75
    %p84 = scmp.eq.s32.totalorder %s17, 0
    %p85 = por %p83, %p84
    %p86 = scmp.ne.s32.totalorder %s74, %s75
    %p87 = scmp.eq.s32.totalorder %s18, 1
    %p88 = por %p86, %p87
    %p90 = scmp.ne.s32.totalorder %s75, %s89
    %p91 = scmp.eq.s32.totalorder %s18, 0
    %p92 = por %p90, %p91
    %s93 = ssub.s32 %s12, %s19
    %p94 = scmp.eq.s32.totalorder %s93, 0
    %s96 = sadd.s32 %s95, 1
    %s97 = scalar_select %p94, %s95, %s96
    %p100 = pneg %p94
    %p101 = scmp.eq.s32.totalorder %s12, 1
    %p102 = por %p100, %p101
    %p103 = scmp.ne.s32.totalorder %s95, %s98
    %p104 = scmp.eq.s32.totalorder %s12, 0
    %p105 = por %p103, %p104
    %p106 = scmp.ne.s32.totalorder %s95, %s98
    %p107 = scmp.eq.s32.totalorder %s17, 1
    %p108 = por %p106, %p107
    %p109 = scmp.ne.s32.totalorder %s98, %s99
    %p110 = scmp.eq.s32.totalorder %s17, 0
    %p111 = por %p109, %p110
    %p112 = scmp.ne.s32.totalorder %s98, %s99
    %p113 = scmp.eq.s32.totalorder %s18, 1
    %p114 = por %p112, %p113
    %p116 = scmp.ne.s32.totalorder %s99, %s115
    %p117 = scmp.eq.s32.totalorder %s18, 0
    %p118 = por %p116, %p117
    %s119 = ssub.s32 %s12, %s19
    %p120 = scmp.eq.s32.totalorder %s119, 0
    %s122 = sadd.s32 %s121, 1
    %s123 = scalar_select %p120, %s121, %s122
    %p126 = pneg %p120
    %p127 = scmp.eq.s32.totalorder %s12, 1
    %p128 = por %p126, %p127
    %p129 = scmp.ne.s32.totalorder %s121, %s124
    %p130 = scmp.eq.s32.totalorder %s12, 0
    %p131 = por %p129, %p130
    %p132 = scmp.ne.s32.totalorder %s121, %s124
    %p133 = scmp.eq.s32.totalorder %s17, 1
    %p134 = por %p132, %p133
    %p135 = scmp.ne.s32.totalorder %s124, %s125
    %p136 = scmp.eq.s32.totalorder %s17, 0
    %p137 = por %p135, %p136
    %p138 = scmp.ne.s32.totalorder %s124, %s125
    %p139 = scmp.eq.s32.totalorder %s18, 1
    %p140 = por %p138, %p139
    %p142 = scmp.ne.s32.totalorder %s125, %s141
    %p143 = scmp.eq.s32.totalorder %s18, 0
    %p144 = por %p142, %p143
    %s145 = ssub.s32 %s12, %s19
    %p146 = scmp.eq.s32.totalorder %s145, 0
    %s148 = sadd.s32 %s147, 1
    %s149 = scalar_select %p146, %s147, %s148
    %p152 = pneg %p146
    %p153 = scmp.eq.s32.totalorder %s12, 1
    %p154 = por %p152, %p153
    %p155 = scmp.ne.s32.totalorder %s147, %s150
    %p156 = scmp.eq.s32.totalorder %s12, 0
    %p157 = por %p155, %p156
    %p158 = scmp.ne.s32.totalorder %s147, %s150
    %p159 = scmp.eq.s32.totalorder %s17, 1
    %p160 = por %p158, %p159
    %p161 = scmp.ne.s32.totalorder %s150, %s151
    %p162 = scmp.eq.s32.totalorder %s17, 0
    %p163 = por %p161, %p162
    %p164 = scmp.ne.s32.totalorder %s150, %s151
    %p165 = scmp.eq.s32.totalorder %s18, 1
    %p166 = por %p164, %p165
    %p168 = scmp.ne.s32.totalorder %s151, %s167
    %p169 = scmp.eq.s32.totalorder %s18, 0
    %p170 = por %p168, %p169
    %p171 = scmp.le.s32.totalorder 1, %s12
    %p172 = scmp.lt.s32.totalorder %s12, 3
    %p173 = pnand %p171, %p172
    %p174 = pneg %p173
    // Predicated region
    $region9: #{cond_discriminator_forward.2} parent=5 // pred_check
      _
    $region10: #{cond_discriminator_forward.2} parent=5 // pred_check_branch
      %176 = sbr.rel (%p173) target = $region12
    $region11: #{cond_discriminator_forward.2} parent=5 // pred_region
      %s177 = ssub.s32 %s12, 1
      // Predicated region
      $region13: #{cond_discriminator_forward.2} parent=11 // pred_check
        %p178 = pneg %p85
      $region14: #{cond_discriminator_forward.2} parent=11 // pred_check_branch
        %180 = sbr.rel (%p178) target = $region16
      $region15: #{cond_discriminator_forward.2} parent=11 // pred_region
        _
      $region16: #{cond_discriminator_forward.2} parent=11 // pred_fallthru
        _
    $region12: #{cond_discriminator_forward.2} parent=5 // pred_fallthru
      _
    %p181 = scmp.lt.s32.totalorder %s12, 2
    // Predicated region
    $region17: #{cond_discriminator_forward.2} parent=5 // pred_check
      %p182 = pneg %p181
    $region18: #{cond_discriminator_forward.2} parent=5 // pred_check_branch
      %184 = sbr.rel (%p182) target = $region20
    $region19: #{cond_discriminator_forward.2} parent=5 // pred_region
      // Predicated region
      $region21: #{cond_discriminator_forward.2} parent=19 // pred_check
        %p185 = pneg %p32
      $region22: #{cond_discriminator_forward.2} parent=19 // pred_check_branch
        %187 = sbr.rel (%p185) target = $region24
      $region23: #{cond_discriminator_forward.2} parent=19 // pred_region
        %p188 = scmp.lt.s32.totalorder %s12, 1
        %s189 = scalar_select %p188, %s12, 1
        %s190 = smul.addr %s189, 7
        %s191 = smul.addr %s190, 8
        %s192 = scalar_lea.vmem %s0, %s191
      $region24: #{cond_discriminator_forward.2} parent=19 // pred_fallthru
        _
      // Predicated region
      $region25: #{cond_discriminator_forward.2} parent=19 // pred_check
        %p193 = pneg %p58
      $region26: #{cond_discriminator_forward.2} parent=19 // pred_check_branch
        %195 = sbr.rel (%p193) target = $region28
      $region27: #{cond_discriminator_forward.2} parent=19 // pred_region
        %p196 = scmp.lt.s32.totalorder %s12, 1
        %s197 = scalar_select %p196, %s12, 1
        %s198 = scalar_lea.vmem %s1, %s197
      $region28: #{cond_discriminator_forward.2} parent=19 // pred_fallthru
        _
    $region20: #{cond_discriminator_forward.2} parent=5 // pred_fallthru
      _
    %p199 = scmp.le.s32.totalorder 1, %s12
    %p200 = scmp.lt.s32.totalorder %s12, 3
    %p201 = pnand %p199, %p200
    %p202 = pneg %p201
    // Predicated region
    $region29: #{cond_discriminator_forward.2} parent=5 // pred_check
      _
    $region30: #{cond_discriminator_forward.2} parent=5 // pred_check_branch
      %204 = sbr.rel (%p201) target = $region32
    $region31: #{cond_discriminator_forward.2} parent=5 // pred_region
      %s205 = ssub.s32 %s12, 1
      %p206 = scmp.lt.s32.totalorder %s17, 1
      %s207 = scalar_select %p206, %s17, 1
      %s208 = smul.addr %s207, 7
      %s209 = smul.addr %s208, 8
      %s210 = scalar_lea.vmem %s0, %s209
      %p211 = pneg %p38
      %p212 = pneg %p35
      %p213 = scmp.lt.s32.totalorder %s17, 1
      %s214 = scalar_select %p213, %s17, 1
      %s215 = scalar_lea.vmem %s1, %s214
      %p216 = pneg %p64
      %p217 = pneg %p61
      %p218 = pneg %p85
      %p219 = pneg %p82
      %p220 = pneg %p111
      %p221 = pneg %p108
      %p222 = scmp.lt.s32.totalorder %s17, 1
      %s223 = scalar_select %p222, %s17, 1
      %s224 = smul.addr %s223, 4
      %s225 = smul.addr %s224, 4
      %s226 = scalar_lea.vmem %s3, %s225
      %p227 = pneg %p137
      %p228 = pneg %p134
      %p229 = scmp.lt.s32.totalorder %s17, 1
      %s230 = scalar_select %p229, %s17, 1
      %s231 = scalar_lea.vmem %s4, %s230
      %p232 = pneg %p163
      %p233 = pneg %p160
      %p234 = scmp.lt.s32.totalorder %s17, 1
      %s235 = scalar_select %p234, %s17, 1
      %s236 = scalar_lea.vmem %s5, %s235
      %p237 = scmp.lt.s32.totalorder %s17, 1
      %s238 = scalar_select %p237, %s17, 1
      %s239 = smul.addr %s238, 7
      %s240 = smul.addr %s239, 8
      %s241 = scalar_lea.vmem %s0, %s240
      %p242 = scmp.lt.s32.totalorder %s17, 1
      %s243 = scalar_select %p242, %s17, 1
      %s244 = scalar_lea.vmem %s1, %s243
      %p245 = scmp.lt.s32.totalorder %s17, 1
      %s246 = scalar_select %p245, %s17, 1
      %s247 = smul.addr %s246, 4
      %s248 = smul.addr %s247, 4
      %s249 = scalar_lea.vmem %s3, %s248
      %p250 = scmp.lt.s32.totalorder %s17, 1
      %s251 = scalar_select %p250, %s17, 1
      %s252 = scalar_lea.vmem %s4, %s251
      %p253 = scmp.lt.s32.totalorder %s17, 1
      %s254 = scalar_select %p253, %s17, 1
      %s255 = scalar_lea.vmem %s5, %s254
      %v256 = vld [vmem:[%s241] sm:$0x7f]
      %v257 = vld [vmem:[%s241 + $0x8] sm:$0x7f]
      %v258 = vld [vmem:[%s241 + $0x10] sm:$0x7f]
      %v259 = vld [vmem:[%s241 + $0x18] sm:$0x7f]
      %v260 = vld [vmem:[%s241 + $0x20] sm:$0x7f]
      %v261 = vld [vmem:[%s241 + $0x28] sm:$0x7f]
      %v262 = vld [vmem:[%s241 + $0x30] sm:$0x7f]
      %v263 = vld [vmem:[%s2] sm:$0x1]
      %v264 = vld [vmem:[%s2 + $0x1] sm:$0x1]
      %v265 = vld [vmem:[%s2 + $0x2] sm:$0x1]
      %v266 = vld [vmem:[%s2 + $0x3] sm:$0x1]
      %v267 = vld [vmem:[%s2 + $0x4] sm:$0x1]
      %v268 = vld [vmem:[%s2 + $0x5] sm:$0x1]
      %v269 = vld [vmem:[%s2 + $0x6] sm:$0x1]
      %v270 = vld [vmem:[%s2 + $0x7] sm:$0x1]
      %v271 = vld [vmem:[%s2 + $0x8] sm:$0x1]
      %v272 = vld [vmem:[%s2 + $0x9] sm:$0x1]
      %v273 = vld [vmem:[%s2 + $0xa] sm:$0x1]
      %v274 = vld [vmem:[%s2 + $0xb] sm:$0x1]
      %v275 = vld [vmem:[%s2 + $0xc] sm:$0x1]
      %v276 = vld [vmem:[%s2 + $0xd] sm:$0x1]
      %v277 = vld [vmem:[%s2 + $0xe] sm:$0x1]
      %v278 = vld [vmem:[%s2 + $0xf] sm:$0x1]
      %v279 = vld [vmem:[%s2 + $0x10] sm:$0x1]
      %v280 = vld [vmem:[%s2 + $0x11] sm:$0x1]
      %v281 = vld [vmem:[%s2 + $0x12] sm:$0x1]
      %v282 = vld [vmem:[%s2 + $0x13] sm:$0x1]
      %v283 = vld [vmem:[%s2 + $0x14] sm:$0x1]
      %v284 = vld [vmem:[%s2 + $0x15] sm:$0x1]
      %v285 = vld [vmem:[%s2 + $0x16] sm:$0x1]
      %v286 = vld [vmem:[%s2 + $0x17] sm:$0x1]
      %v287 = vld [vmem:[%s2 + $0x18] sm:$0x1]
      %v288 = vld [vmem:[%s2 + $0x19] sm:$0x1]
      %v289 = vld [vmem:[%s2 + $0x1a] sm:$0x1]
      %v290 = vld [vmem:[%s2 + $0x1b] sm:$0x1]
      %v291 = vld [vmem:[%s2 + $0x1c] sm:$0x1]
      %v292 = vld [vmem:[%s2 + $0x1d] sm:$0x1]
      %v293 = vld [vmem:[%s2 + $0x1e] sm:$0x1]
      %v294 = vld [vmem:[%s2 + $0x1f] sm:$0x1]
      %v295 = vld [vmem:[%s2 + $0x20] sm:$0x1]
      %v296 = vld [vmem:[%s2 + $0x21] sm:$0x1]
      %v297 = vld [vmem:[%s2 + $0x22] sm:$0x1]
      %v298 = vld [vmem:[%s2 + $0x23] sm:$0x1]
      %v299 = vld [vmem:[%s2 + $0x24] sm:$0x1]
      %v300 = vld [vmem:[%s2 + $0x25] sm:$0x1]
      %v301 = vld [vmem:[%s2 + $0x26] sm:$0x1]
      %v302 = vld [vmem:[%s2 + $0x27] sm:$0x1]
      %v303 = vld [vmem:[%s2 + $0x28] sm:$0x1]
      %v304 = vld [vmem:[%s2 + $0x29] sm:$0x1]
      %v305 = vld [vmem:[%s2 + $0x2a] sm:$0x1]
      %v306 = vld [vmem:[%s2 + $0x2b] sm:$0x1]
      %v307 = vld [vmem:[%s2 + $0x2c] sm:$0x1]
      %v308 = vld [vmem:[%s2 + $0x2d] sm:$0x1]
      %v309 = vld [vmem:[%s2 + $0x2e] sm:$0x1]
      %v310 = vld [vmem:[%s2 + $0x2f] sm:$0x1]
      %v311 = vld [vmem:[%s2 + $0x30] sm:$0x1]
      %v312 = vld [vmem:[%s2 + $0x31] sm:$0x1]
      %v313 = vld [vmem:[%s2 + $0x32] sm:$0x1]
      %v314 = vld [vmem:[%s2 + $0x33] sm:$0x1]
      %v315 = vld [vmem:[%s2 + $0x34] sm:$0x1]
      %v316 = vld [vmem:[%s2 + $0x35] sm:$0x1]
      %v317 = vld [vmem:[%s2 + $0x36] sm:$0x1]
      %v318 = vld [vmem:[%s2 + $0x37] sm:$0x1]
      %v319 = vld [vmem:[%s2 + $0x38] sm:$0x1]
      %v320 = vld [vmem:[%s2 + $0x39] sm:$0x1]
      %v321 = vld [vmem:[%s2 + $0x3a] sm:$0x1]
      %v322 = vld [vmem:[%s2 + $0x3b] sm:$0x1]
      %v323 = vld [vmem:[%s2 + $0x3c] sm:$0x1]
      %v324 = vld [vmem:[%s2 + $0x3d] sm:$0x1]
      %v325 = vld [vmem:[%s2 + $0x3e] sm:$0x1]
      %v326 = vld [vmem:[%s2 + $0x3f] sm:$0x1]
      %328 = vset.pattern.permute.xlu0 0
      %329 = vperm.xlu0 %328, %v256
      %v330 = vpop.permute.xlu0 %329
      %333 = vset.pattern.permute.xlu0 0
      %334 = vperm.xlu0 %333, %v257
      %v335 = vpop.permute.xlu0 %334
      %338 = vset.pattern.permute.xlu0 0
      %339 = vperm.xlu0 %338, %v258
      %v340 = vpop.permute.xlu0 %339
      %343 = vset.pattern.permute.xlu0 0
      %344 = vperm.xlu0 %343, %v259
      %v345 = vpop.permute.xlu0 %344
      %v348 = vperm.slane %v263, 0
      %v350 = vmul.f32 %v330, %v348
      %v351 = vmul.f32 %v335, %v348
      %v352 = vmul.f32 %v340, %v348
      %v353 = vmul.f32 %v345, %v348
      %v354 = vadd.f32 %v350, 0.0
      %v355 = vadd.f32 %v351, 0.0
      %v356 = vadd.f32 %v352, 0.0
      %v357 = vadd.f32 %v353, 0.0
      %358 = vset.pattern.permute.xlu0 1
      %359 = vperm.xlu0 %358, %v256
      %v360 = vpop.permute.xlu0 %359
      %362 = vset.pattern.permute.xlu0 1
      %363 = vperm.xlu0 %362, %v257
      %v364 = vpop.permute.xlu0 %363
      %366 = vset.pattern.permute.xlu0 1
      %367 = vperm.xlu0 %366, %v258
      %v368 = vpop.permute.xlu0 %367
      %370 = vset.pattern.permute.xlu0 1
      %371 = vperm.xlu0 %370, %v259
      %v372 = vpop.permute.xlu0 %371
      %v375 = vperm.slane %v264, 0
      %v377 = vmul.f32 %v360, %v375
      %v378 = vmul.f32 %v364, %v375
      %v379 = vmul.f32 %v368, %v375
      %v380 = vmul.f32 %v372, %v375
      %v381 = vadd.f32 %v354, %v377
      %v382 = vadd.f32 %v355, %v378
      %v383 = vadd.f32 %v356, %v379
      %v384 = vadd.f32 %v357, %v380
      %385 = vset.pattern.permute.xlu0 2
      %386 = vperm.xlu0 %385, %v256
      %v387 = vpop.permute.xlu0 %386
      %389 = vset.pattern.permute.xlu0 2
      %390 = vperm.xlu0 %389, %v257
      %v391 = vpop.permute.xlu0 %390
      %393 = vset.pattern.permute.xlu0 2
      %394 = vperm.xlu0 %393, %v258
      %v395 = vpop.permute.xlu0 %394
      %397 = vset.pattern.permute.xlu0 2
      %398 = vperm.xlu0 %397, %v259
      %v399 = vpop.permute.xlu0 %398
      %v402 = vperm.slane %v265, 0
      %v404 = vmul.f32 %v387, %v402
      %v405 = vmul.f32 %v391, %v402
      %v406 = vmul.f32 %v395, %v402
      %v407 = vmul.f32 %v399, %v402
      %v408 = vadd.f32 %v381, %v404
      %v409 = vadd.f32 %v382, %v405
      %v410 = vadd.f32 %v383, %v406
      %v411 = vadd.f32 %v384, %v407
      %412 = vset.pattern.permute.xlu0 3
      %413 = vperm.xlu0 %412, %v256
      %v414 = vpop.permute.xlu0 %413
      %416 = vset.pattern.permute.xlu0 3
      %417 = vperm.xlu0 %416, %v257
      %v418 = vpop.permute.xlu0 %417
      %420 = vset.pattern.permute.xlu0 3
      %421 = vperm.xlu0 %420, %v258
      %v422 = vpop.permute.xlu0 %421
      %424 = vset.pattern.permute.xlu0 3
      %425 = vperm.xlu0 %424, %v259
      %v426 = vpop.permute.xlu0 %425
      %v429 = vperm.slane %v266, 0
      %v431 = vmul.f32 %v414, %v429
      %v432 = vmul.f32 %v418, %v429
      %v433 = vmul.f32 %v422, %v429
      %v434 = vmul.f32 %v426, %v429
      %v435 = vadd.f32 %v408, %v431
      %v436 = vadd.f32 %v409, %v432
      %v437 = vadd.f32 %v410, %v433
      %v438 = vadd.f32 %v411, %v434
      %v440 = vperm.slane %v267, 0
      %v442 = vmul.f32 %v330, %v440
      %v443 = vmul.f32 %v335, %v440
      %v444 = vmul.f32 %v340, %v440
      %v445 = vmul.f32 %v345, %v440
      %v450 = vrot.slane %v442, 1
      %v451 = vrot.slane %v443, 1
      %v452 = vrot.slane %v444, 1
      %v453 = vrot.slane %v445, 1
      %v458 = vadd.f32 %v435, %v450
      %v459 = vadd.f32 %v436, %v451
      %v460 = vadd.f32 %v437, %v452
      %v461 = vadd.f32 %v438, %v453
      %v463 = vperm.slane %v268, 0
      %v465 = vmul.f32 %v360, %v463
      %v466 = vmul.f32 %v364, %v463
      %v467 = vmul.f32 %v368, %v463
      %v468 = vmul.f32 %v372, %v463
      %v473 = vrot.slane %v465, 1
      %v474 = vrot.slane %v466, 1
      %v475 = vrot.slane %v467, 1
      %v476 = vrot.slane %v468, 1
      %v481 = vadd.f32 %v458, %v473
      %v482 = vadd.f32 %v459, %v474
      %v483 = vadd.f32 %v460, %v475
      %v484 = vadd.f32 %v461, %v476
      %v486 = vperm.slane %v269, 0
      %v488 = vmul.f32 %v387, %v486
      %v489 = vmul.f32 %v391, %v486
      %v490 = vmul.f32 %v395, %v486
      %v491 = vmul.f32 %v399, %v486
      %v496 = vrot.slane %v488, 1
      %v497 = vrot.slane %v489, 1
      %v498 = vrot.slane %v490, 1
      %v499 = vrot.slane %v491, 1
      %v504 = vadd.f32 %v481, %v496
      %v505 = vadd.f32 %v482, %v497
      %v506 = vadd.f32 %v483, %v498
      %v507 = vadd.f32 %v484, %v499
      %v509 = vperm.slane %v270, 0
      %v511 = vmul.f32 %v414, %v509
      %v512 = vmul.f32 %v418, %v509
      %v513 = vmul.f32 %v422, %v509
      %v514 = vmul.f32 %v426, %v509
      %v519 = vrot.slane %v511, 1
      %v520 = vrot.slane %v512, 1
      %v521 = vrot.slane %v513, 1
      %v522 = vrot.slane %v514, 1
      %v527 = vadd.f32 %v504, %v519
      %v528 = vadd.f32 %v505, %v520
      %v529 = vadd.f32 %v506, %v521
      %v530 = vadd.f32 %v507, %v522
      %v532 = vperm.slane %v271, 0
      %v534 = vmul.f32 %v330, %v532
      %v535 = vmul.f32 %v335, %v532
      %v536 = vmul.f32 %v340, %v532
      %v537 = vmul.f32 %v345, %v532
      %v542 = vrot.slane %v534, 2
      %v543 = vrot.slane %v535, 2
      %v544 = vrot.slane %v536, 2
      %v545 = vrot.slane %v537, 2
      %v550 = vadd.f32 %v527, %v542
      %v551 = vadd.f32 %v528, %v543
      %v552 = vadd.f32 %v529, %v544
      %v553 = vadd.f32 %v530, %v545
      %v555 = vperm.slane %v272, 0
      %v557 = vmul.f32 %v360, %v555
      %v558 = vmul.f32 %v364, %v555
      %v559 = vmul.f32 %v368, %v555
      %v560 = vmul.f32 %v372, %v555
      %v565 = vrot.slane %v557, 2
      %v566 = vrot.slane %v558, 2
      %v567 = vrot.slane %v559, 2
      %v568 = vrot.slane %v560, 2
      %v573 = vadd.f32 %v550, %v565
      %v574 = vadd.f32 %v551, %v566
      %v575 = vadd.f32 %v552, %v567
      %v576 = vadd.f32 %v553, %v568
      %v578 = vperm.slane %v273, 0
      %v580 = vmul.f32 %v387, %v578
      %v581 = vmul.f32 %v391, %v578
      %v582 = vmul.f32 %v395, %v578
      %v583 = vmul.f32 %v399, %v578
      %v588 = vrot.slane %v580, 2
      %v589 = vrot.slane %v581, 2
      %v590 = vrot.slane %v582, 2
      %v591 = vrot.slane %v583, 2
      %v596 = vadd.f32 %v573, %v588
      %v597 = vadd.f32 %v574, %v589
      %v598 = vadd.f32 %v575, %v590
      %v599 = vadd.f32 %v576, %v591
      %v601 = vperm.slane %v274, 0
      %v603 = vmul.f32 %v414, %v601
      %v604 = vmul.f32 %v418, %v601
      %v605 = vmul.f32 %v422, %v601
      %v606 = vmul.f32 %v426, %v601
      %v611 = vrot.slane %v603, 2
      %v612 = vrot.slane %v604, 2
      %v613 = vrot.slane %v605, 2
      %v614 = vrot.slane %v606, 2
      %v619 = vadd.f32 %v596, %v611
      %v620 = vadd.f32 %v597, %v612
      %v621 = vadd.f32 %v598, %v613
      %v622 = vadd.f32 %v599, %v614
      %v624 = vperm.slane %v275, 0
      %v626 = vmul.f32 %v330, %v624
      %v627 = vmul.f32 %v335, %v624
      %v628 = vmul.f32 %v340, %v624
      %v629 = vmul.f32 %v345, %v624
      %v634 = vrot.slane %v626, 3
      %v635 = vrot.slane %v627, 3
      %v636 = vrot.slane %v628, 3
      %v637 = vrot.slane %v629, 3
      %v642 = vadd.f32 %v619, %v634
      %v643 = vadd.f32 %v620, %v635
      %v644 = vadd.f32 %v621, %v636
      %v645 = vadd.f32 %v622, %v637
      %v647 = vperm.slane %v276, 0
      %v649 = vmul.f32 %v360, %v647
      %v650 = vmul.f32 %v364, %v647
      %v651 = vmul.f32 %v368, %v647
      %v652 = vmul.f32 %v372, %v647
      %v657 = vrot.slane %v649, 3
      %v658 = vrot.slane %v650, 3
      %v659 = vrot.slane %v651, 3
      %v660 = vrot.slane %v652, 3
      %v665 = vadd.f32 %v642, %v657
      %v666 = vadd.f32 %v643, %v658
      %v667 = vadd.f32 %v644, %v659
      %v668 = vadd.f32 %v645, %v660
      %v670 = vperm.slane %v277, 0
      %v672 = vmul.f32 %v387, %v670
      %v673 = vmul.f32 %v391, %v670
      %v674 = vmul.f32 %v395, %v670
      %v675 = vmul.f32 %v399, %v670
      %v680 = vrot.slane %v672, 3
      %v681 = vrot.slane %v673, 3
      %v682 = vrot.slane %v674, 3
      %v683 = vrot.slane %v675, 3
      %v688 = vadd.f32 %v665, %v680
      %v689 = vadd.f32 %v666, %v681
      %v690 = vadd.f32 %v667, %v682
      %v691 = vadd.f32 %v668, %v683
      %v693 = vperm.slane %v278, 0
      %v695 = vmul.f32 %v414, %v693
      %v696 = vmul.f32 %v418, %v693
      %v697 = vmul.f32 %v422, %v693
      %v698 = vmul.f32 %v426, %v693
      %v703 = vrot.slane %v695, 3
      %v704 = vrot.slane %v696, 3
      %v705 = vrot.slane %v697, 3
      %v706 = vrot.slane %v698, 3
      %v711 = vadd.f32 %v688, %v703
      %v712 = vadd.f32 %v689, %v704
      %v713 = vadd.f32 %v690, %v705
      %v714 = vadd.f32 %v691, %v706
      %716 = vset.pattern.permute.xlu0 0
      %717 = vperm.xlu0 %716, %v260
      %v718 = vpop.permute.xlu0 %717
      %v721 = vperm.slane %v279, 0
      %v723 = vmul.f32 %v335, %v721
      %v724 = vmul.f32 %v340, %v721
      %v725 = vmul.f32 %v345, %v721
      %v726 = vmul.f32 %v718, %v721
      %v727 = vadd.f32 %v711, %v723
      %v728 = vadd.f32 %v712, %v724
      %v729 = vadd.f32 %v713, %v725
      %v730 = vadd.f32 %v714, %v726
      %731 = vset.pattern.permute.xlu0 1
      %732 = vperm.xlu0 %731, %v260
      %v733 = vpop.permute.xlu0 %732
      %v736 = vperm.slane %v280, 0
      %v738 = vmul.f32 %v364, %v736
      %v739 = vmul.f32 %v368, %v736
      %v740 = vmul.f32 %v372, %v736
      %v741 = vmul.f32 %v733, %v736
      %v742 = vadd.f32 %v727, %v738
      %v743 = vadd.f32 %v728, %v739
      %v744 = vadd.f32 %v729, %v740
      %v745 = vadd.f32 %v730, %v741
      %746 = vset.pattern.permute.xlu0 2
      %747 = vperm.xlu0 %746, %v260
      %v748 = vpop.permute.xlu0 %747
      %v751 = vperm.slane %v281, 0
      %v753 = vmul.f32 %v391, %v751
      %v754 = vmul.f32 %v395, %v751
      %v755 = vmul.f32 %v399, %v751
      %v756 = vmul.f32 %v748, %v751
      %v757 = vadd.f32 %v742, %v753
      %v758 = vadd.f32 %v743, %v754
      %v759 = vadd.f32 %v744, %v755
      %v760 = vadd.f32 %v745, %v756
      %761 = vset.pattern.permute.xlu0 3
      %762 = vperm.xlu0 %761, %v260
      %v763 = vpop.permute.xlu0 %762
      %v766 = vperm.slane %v282, 0
      %v768 = vmul.f32 %v418, %v766
      %v769 = vmul.f32 %v422, %v766
      %v770 = vmul.f32 %v426, %v766
      %v771 = vmul.f32 %v763, %v766
      %v772 = vadd.f32 %v757, %v768
      %v773 = vadd.f32 %v758, %v769
      %v774 = vadd.f32 %v759, %v770
      %v775 = vadd.f32 %v760, %v771
      %v777 = vperm.slane %v283, 0
      %v779 = vmul.f32 %v335, %v777
      %v780 = vmul.f32 %v340, %v777
      %v781 = vmul.f32 %v345, %v777
      %v782 = vmul.f32 %v718, %v777
      %v787 = vrot.slane %v779, 1
      %v788 = vrot.slane %v780, 1
      %v789 = vrot.slane %v781, 1
      %v790 = vrot.slane %v782, 1
      %v795 = vadd.f32 %v772, %v787
      %v796 = vadd.f32 %v773, %v788
      %v797 = vadd.f32 %v774, %v789
      %v798 = vadd.f32 %v775, %v790
      %v800 = vperm.slane %v284, 0
      %v802 = vmul.f32 %v364, %v800
      %v803 = vmul.f32 %v368, %v800
      %v804 = vmul.f32 %v372, %v800
      %v805 = vmul.f32 %v733, %v800
      %v810 = vrot.slane %v802, 1
      %v811 = vrot.slane %v803, 1
      %v812 = vrot.slane %v804, 1
      %v813 = vrot.slane %v805, 1
      %v818 = vadd.f32 %v795, %v810
      %v819 = vadd.f32 %v796, %v811
      %v820 = vadd.f32 %v797, %v812
      %v821 = vadd.f32 %v798, %v813
      %v823 = vperm.slane %v285, 0
      %v825 = vmul.f32 %v391, %v823
      %v826 = vmul.f32 %v395, %v823
      %v827 = vmul.f32 %v399, %v823
      %v828 = vmul.f32 %v748, %v823
      %v833 = vrot.slane %v825, 1
      %v834 = vrot.slane %v826, 1
      %v835 = vrot.slane %v827, 1
      %v836 = vrot.slane %v828, 1
      %v841 = vadd.f32 %v818, %v833
      %v842 = vadd.f32 %v819, %v834
      %v843 = vadd.f32 %v820, %v835
      %v844 = vadd.f32 %v821, %v836
      %v846 = vperm.slane %v286, 0
      %v848 = vmul.f32 %v418, %v846
      %v849 = vmul.f32 %v422, %v846
      %v850 = vmul.f32 %v426, %v846
      %v851 = vmul.f32 %v763, %v846
      %v856 = vrot.slane %v848, 1
      %v857 = vrot.slane %v849, 1
      %v858 = vrot.slane %v850, 1
      %v859 = vrot.slane %v851, 1
      %v864 = vadd.f32 %v841, %v856
      %v865 = vadd.f32 %v842, %v857
      %v866 = vadd.f32 %v843, %v858
      %v867 = vadd.f32 %v844, %v859
      %v869 = vperm.slane %v287, 0
      %v871 = vmul.f32 %v335, %v869
      %v872 = vmul.f32 %v340, %v869
      %v873 = vmul.f32 %v345, %v869
      %v874 = vmul.f32 %v718, %v869
      %v879 = vrot.slane %v871, 2
      %v880 = vrot.slane %v872, 2
      %v881 = vrot.slane %v873, 2
      %v882 = vrot.slane %v874, 2
      %v887 = vadd.f32 %v864, %v879
      %v888 = vadd.f32 %v865, %v880
      %v889 = vadd.f32 %v866, %v881
      %v890 = vadd.f32 %v867, %v882
      %v892 = vperm.slane %v288, 0
      %v894 = vmul.f32 %v364, %v892
      %v895 = vmul.f32 %v368, %v892
      %v896 = vmul.f32 %v372, %v892
      %v897 = vmul.f32 %v733, %v892
      %v902 = vrot.slane %v894, 2
      %v903 = vrot.slane %v895, 2
      %v904 = vrot.slane %v896, 2
      %v905 = vrot.slane %v897, 2
      %v910 = vadd.f32 %v887, %v902
      %v911 = vadd.f32 %v888, %v903
      %v912 = vadd.f32 %v889, %v904
      %v913 = vadd.f32 %v890, %v905
      %v915 = vperm.slane %v289, 0
      %v917 = vmul.f32 %v391, %v915
      %v918 = vmul.f32 %v395, %v915
      %v919 = vmul.f32 %v399, %v915
      %v920 = vmul.f32 %v748, %v915
      %v925 = vrot.slane %v917, 2
      %v926 = vrot.slane %v918, 2
      %v927 = vrot.slane %v919, 2
      %v928 = vrot.slane %v920, 2
      %v933 = vadd.f32 %v910, %v925
      %v934 = vadd.f32 %v911, %v926
      %v935 = vadd.f32 %v912, %v927
      %v936 = vadd.f32 %v913, %v928
      %v938 = vperm.slane %v290, 0
      %v940 = vmul.f32 %v418, %v938
      %v941 = vmul.f32 %v422, %v938
      %v942 = vmul.f32 %v426, %v938
      %v943 = vmul.f32 %v763, %v938
      %v948 = vrot.slane %v940, 2
      %v949 = vrot.slane %v941, 2
      %v950 = vrot.slane %v942, 2
      %v951 = vrot.slane %v943, 2
      %v956 = vadd.f32 %v933, %v948
      %v957 = vadd.f32 %v934, %v949
      %v958 = vadd.f32 %v935, %v950
      %v959 = vadd.f32 %v936, %v951
      %v961 = vperm.slane %v291, 0
      %v963 = vmul.f32 %v335, %v961
      %v964 = vmul.f32 %v340, %v961
      %v965 = vmul.f32 %v345, %v961
      %v966 = vmul.f32 %v718, %v961
      %v971 = vrot.slane %v963, 3
      %v972 = vrot.slane %v964, 3
      %v973 = vrot.slane %v965, 3
      %v974 = vrot.slane %v966, 3
      %v979 = vadd.f32 %v956, %v971
      %v980 = vadd.f32 %v957, %v972
      %v981 = vadd.f32 %v958, %v973
      %v982 = vadd.f32 %v959, %v974
      %v984 = vperm.slane %v292, 0
      %v986 = vmul.f32 %v364, %v984
      %v987 = vmul.f32 %v368, %v984
      %v988 = vmul.f32 %v372, %v984
      %v989 = vmul.f32 %v733, %v984
      %v994 = vrot.slane %v986, 3
      %v995 = vrot.slane %v987, 3
      %v996 = vrot.slane %v988, 3
      %v997 = vrot.slane %v989, 3
      %v1002 = vadd.f32 %v979, %v994
      %v1003 = vadd.f32 %v980, %v995
      %v1004 = vadd.f32 %v981, %v996
      %v1005 = vadd.f32 %v982, %v997
      %v1007 = vperm.slane %v293, 0
      %v1009 = vmul.f32 %v391, %v1007
      %v1010 = vmul.f32 %v395, %v1007
      %v1011 = vmul.f32 %v399, %v1007
      %v1012 = vmul.f32 %v748, %v1007
      %v1017 = vrot.slane %v1009, 3
      %v1018 = vrot.slane %v1010, 3
      %v1019 = vrot.slane %v1011, 3
      %v1020 = vrot.slane %v1012, 3
      %v1025 = vadd.f32 %v1002, %v1017
      %v1026 = vadd.f32 %v1003, %v1018
      %v1027 = vadd.f32 %v1004, %v1019
      %v1028 = vadd.f32 %v1005, %v1020
      %v1030 = vperm.slane %v294, 0
      %v1032 = vmul.f32 %v418, %v1030
      %v1033 = vmul.f32 %v422, %v1030
      %v1034 = vmul.f32 %v426, %v1030
      %v1035 = vmul.f32 %v763, %v1030
      %v1040 = vrot.slane %v1032, 3
      %v1041 = vrot.slane %v1033, 3
      %v1042 = vrot.slane %v1034, 3
      %v1043 = vrot.slane %v1035, 3
      %v1048 = vadd.f32 %v1025, %v1040
      %v1049 = vadd.f32 %v1026, %v1041
      %v1050 = vadd.f32 %v1027, %v1042
      %v1051 = vadd.f32 %v1028, %v1043
      %1053 = vset.pattern.permute.xlu0 0
      %1054 = vperm.xlu0 %1053, %v261
      %v1055 = vpop.permute.xlu0 %1054
      %v1058 = vperm.slane %v295, 0
      %v1060 = vmul.f32 %v340, %v1058
      %v1061 = vmul.f32 %v345, %v1058
      %v1062 = vmul.f32 %v718, %v1058
      %v1063 = vmul.f32 %v1055, %v1058
      %v1064 = vadd.f32 %v1048, %v1060
      %v1065 = vadd.f32 %v1049, %v1061
      %v1066 = vadd.f32 %v1050, %v1062
      %v1067 = vadd.f32 %v1051, %v1063
      %1068 = vset.pattern.permute.xlu0 1
      %1069 = vperm.xlu0 %1068, %v261
      %v1070 = vpop.permute.xlu0 %1069
      %v1073 = vperm.slane %v296, 0
      %v1075 = vmul.f32 %v368, %v1073
      %v1076 = vmul.f32 %v372, %v1073
      %v1077 = vmul.f32 %v733, %v1073
      %v1078 = vmul.f32 %v1070, %v1073
      %v1079 = vadd.f32 %v1064, %v1075
      %v1080 = vadd.f32 %v1065, %v1076
      %v1081 = vadd.f32 %v1066, %v1077
      %v1082 = vadd.f32 %v1067, %v1078
      %1083 = vset.pattern.permute.xlu0 2
      %1084 = vperm.xlu0 %1083, %v261
      %v1085 = vpop.permute.xlu0 %1084
      %v1088 = vperm.slane %v297, 0
      %v1090 = vmul.f32 %v395, %v1088
      %v1091 = vmul.f32 %v399, %v1088
      %v1092 = vmul.f32 %v748, %v1088
      %v1093 = vmul.f32 %v1085, %v1088
      %v1094 = vadd.f32 %v1079, %v1090
      %v1095 = vadd.f32 %v1080, %v1091
      %v1096 = vadd.f32 %v1081, %v1092
      %v1097 = vadd.f32 %v1082, %v1093
      %1098 = vset.pattern.permute.xlu0 3
      %1099 = vperm.xlu0 %1098, %v261
      %v1100 = vpop.permute.xlu0 %1099
      %v1103 = vperm.slane %v298, 0
      %v1105 = vmul.f32 %v422, %v1103
      %v1106 = vmul.f32 %v426, %v1103
      %v1107 = vmul.f32 %v763, %v1103
      %v1108 = vmul.f32 %v1100, %v1103
      %v1109 = vadd.f32 %v1094, %v1105
      %v1110 = vadd.f32 %v1095, %v1106
      %v1111 = vadd.f32 %v1096, %v1107
      %v1112 = vadd.f32 %v1097, %v1108
      %v1114 = vperm.slane %v299, 0
      %v1116 = vmul.f32 %v340, %v1114
      %v1117 = vmul.f32 %v345, %v1114
      %v1118 = vmul.f32 %v718, %v1114
      %v1119 = vmul.f32 %v1055, %v1114
      %v1124 = vrot.slane %v1116, 1
      %v1125 = vrot.slane %v1117, 1
      %v1126 = vrot.slane %v1118, 1
      %v1127 = vrot.slane %v1119, 1
      %v1132 = vadd.f32 %v1109, %v1124
      %v1133 = vadd.f32 %v1110, %v1125
      %v1134 = vadd.f32 %v1111, %v1126
      %v1135 = vadd.f32 %v1112, %v1127
      %v1137 = vperm.slane %v300, 0
      %v1139 = vmul.f32 %v368, %v1137
      %v1140 = vmul.f32 %v372, %v1137
      %v1141 = vmul.f32 %v733, %v1137
      %v1142 = vmul.f32 %v1070, %v1137
      %v1147 = vrot.slane %v1139, 1
      %v1148 = vrot.slane %v1140, 1
      %v1149 = vrot.slane %v1141, 1
      %v1150 = vrot.slane %v1142, 1
      %v1155 = vadd.f32 %v1132, %v1147
      %v1156 = vadd.f32 %v1133, %v1148
      %v1157 = vadd.f32 %v1134, %v1149
      %v1158 = vadd.f32 %v1135, %v1150
      %v1160 = vperm.slane %v301, 0
      %v1162 = vmul.f32 %v395, %v1160
      %v1163 = vmul.f32 %v399, %v1160
      %v1164 = vmul.f32 %v748, %v1160
      %v1165 = vmul.f32 %v1085, %v1160
      %v1170 = vrot.slane %v1162, 1
      %v1171 = vrot.slane %v1163, 1
      %v1172 = vrot.slane %v1164, 1
      %v1173 = vrot.slane %v1165, 1
      %v1178 = vadd.f32 %v1155, %v1170
      %v1179 = vadd.f32 %v1156, %v1171
      %v1180 = vadd.f32 %v1157, %v1172
      %v1181 = vadd.f32 %v1158, %v1173
      %v1183 = vperm.slane %v302, 0
      %v1185 = vmul.f32 %v422, %v1183
      %v1186 = vmul.f32 %v426, %v1183
      %v1187 = vmul.f32 %v763, %v1183
      %v1188 = vmul.f32 %v1100, %v1183
      %v1193 = vrot.slane %v1185, 1
      %v1194 = vrot.slane %v1186, 1
      %v1195 = vrot.slane %v1187, 1
      %v1196 = vrot.slane %v1188, 1
      %v1201 = vadd.f32 %v1178, %v1193
      %v1202 = vadd.f32 %v1179, %v1194
      %v1203 = vadd.f32 %v1180, %v1195
      %v1204 = vadd.f32 %v1181, %v1196
      %v1206 = vperm.slane %v303, 0
      %v1208 = vmul.f32 %v340, %v1206
      %v1209 = vmul.f32 %v345, %v1206
      %v1210 = vmul.f32 %v718, %v1206
      %v1211 = vmul.f32 %v1055, %v1206
      %v1216 = vrot.slane %v1208, 2
      %v1217 = vrot.slane %v1209, 2
      %v1218 = vrot.slane %v1210, 2
      %v1219 = vrot.slane %v1211, 2
      %v1224 = vadd.f32 %v1201, %v1216
      %v1225 = vadd.f32 %v1202, %v1217
      %v1226 = vadd.f32 %v1203, %v1218
      %v1227 = vadd.f32 %v1204, %v1219
      %v1229 = vperm.slane %v304, 0
      %v1231 = vmul.f32 %v368, %v1229
      %v1232 = vmul.f32 %v372, %v1229
      %v1233 = vmul.f32 %v733, %v1229
      %v1234 = vmul.f32 %v1070, %v1229
      %v1239 = vrot.slane %v1231, 2
      %v1240 = vrot.slane %v1232, 2
      %v1241 = vrot.slane %v1233, 2
      %v1242 = vrot.slane %v1234, 2
      %v1247 = vadd.f32 %v1224, %v1239
      %v1248 = vadd.f32 %v1225, %v1240
      %v1249 = vadd.f32 %v1226, %v1241
      %v1250 = vadd.f32 %v1227, %v1242
      %v1252 = vperm.slane %v305, 0
      %v1254 = vmul.f32 %v395, %v1252
      %v1255 = vmul.f32 %v399, %v1252
      %v1256 = vmul.f32 %v748, %v1252
      %v1257 = vmul.f32 %v1085, %v1252
      %v1262 = vrot.slane %v1254, 2
      %v1263 = vrot.slane %v1255, 2
      %v1264 = vrot.slane %v1256, 2
      %v1265 = vrot.slane %v1257, 2
      %v1270 = vadd.f32 %v1247, %v1262
      %v1271 = vadd.f32 %v1248, %v1263
      %v1272 = vadd.f32 %v1249, %v1264
      %v1273 = vadd.f32 %v1250, %v1265
      %v1275 = vperm.slane %v306, 0
      %v1277 = vmul.f32 %v422, %v1275
      %v1278 = vmul.f32 %v426, %v1275
      %v1279 = vmul.f32 %v763, %v1275
      %v1280 = vmul.f32 %v1100, %v1275
      %v1285 = vrot.slane %v1277, 2
      %v1286 = vrot.slane %v1278, 2
      %v1287 = vrot.slane %v1279, 2
      %v1288 = vrot.slane %v1280, 2
      %v1293 = vadd.f32 %v1270, %v1285
      %v1294 = vadd.f32 %v1271, %v1286
      %v1295 = vadd.f32 %v1272, %v1287
      %v1296 = vadd.f32 %v1273, %v1288
      %v1298 = vperm.slane %v307, 0
      %v1300 = vmul.f32 %v340, %v1298
      %v1301 = vmul.f32 %v345, %v1298
      %v1302 = vmul.f32 %v718, %v1298
      %v1303 = vmul.f32 %v1055, %v1298
      %v1308 = vrot.slane %v1300, 3
      %v1309 = vrot.slane %v1301, 3
      %v1310 = vrot.slane %v1302, 3
      %v1311 = vrot.slane %v1303, 3
      %v1316 = vadd.f32 %v1293, %v1308
      %v1317 = vadd.f32 %v1294, %v1309
      %v1318 = vadd.f32 %v1295, %v1310
      %v1319 = vadd.f32 %v1296, %v1311
      %v1321 = vperm.slane %v308, 0
      %v1323 = vmul.f32 %v368, %v1321
      %v1324 = vmul.f32 %v372, %v1321
      %v1325 = vmul.f32 %v733, %v1321
      %v1326 = vmul.f32 %v1070, %v1321
      %v1331 = vrot.slane %v1323, 3
      %v1332 = vrot.slane %v1324, 3
      %v1333 = vrot.slane %v1325, 3
      %v1334 = vrot.slane %v1326, 3
      %v1339 = vadd.f32 %v1316, %v1331
      %v1340 = vadd.f32 %v1317, %v1332
      %v1341 = vadd.f32 %v1318, %v1333
      %v1342 = vadd.f32 %v1319, %v1334
      %v1344 = vperm.slane %v309, 0
      %v1346 = vmul.f32 %v395, %v1344
      %v1347 = vmul.f32 %v399, %v1344
      %v1348 = vmul.f32 %v748, %v1344
      %v1349 = vmul.f32 %v1085, %v1344
      %v1354 = vrot.slane %v1346, 3
      %v1355 = vrot.slane %v1347, 3
      %v1356 = vrot.slane %v1348, 3
      %v1357 = vrot.slane %v1349, 3
      %v1362 = vadd.f32 %v1339, %v1354
      %v1363 = vadd.f32 %v1340, %v1355
      %v1364 = vadd.f32 %v1341, %v1356
      %v1365 = vadd.f32 %v1342, %v1357
      %v1367 = vperm.slane %v310, 0
      %v1369 = vmul.f32 %v422, %v1367
      %v1370 = vmul.f32 %v426, %v1367
      %v1371 = vmul.f32 %v763, %v1367
      %v1372 = vmul.f32 %v1100, %v1367
      %v1377 = vrot.slane %v1369, 3
      %v1378 = vrot.slane %v1370, 3
      %v1379 = vrot.slane %v1371, 3
      %v1380 = vrot.slane %v1372, 3
      %v1385 = vadd.f32 %v1362, %v1377
      %v1386 = vadd.f32 %v1363, %v1378
      %v1387 = vadd.f32 %v1364, %v1379
      %v1388 = vadd.f32 %v1365, %v1380
      %1390 = vset.pattern.permute.xlu0 0
      %1391 = vperm.xlu0 %1390, %v262
      %v1392 = vpop.permute.xlu0 %1391
      %v1395 = vperm.slane %v311, 0
      %v1397 = vmul.f32 %v345, %v1395
      %v1398 = vmul.f32 %v718, %v1395
      %v1399 = vmul.f32 %v1055, %v1395
      %v1400 = vmul.f32 %v1392, %v1395
      %v1401 = vadd.f32 %v1385, %v1397
      %v1402 = vadd.f32 %v1386, %v1398
      %v1403 = vadd.f32 %v1387, %v1399
      %v1404 = vadd.f32 %v1388, %v1400
      %1405 = vset.pattern.permute.xlu0 1
      %1406 = vperm.xlu0 %1405, %v262
      %v1407 = vpop.permute.xlu0 %1406
      %v1410 = vperm.slane %v312, 0
      %v1412 = vmul.f32 %v372, %v1410
      %v1413 = vmul.f32 %v733, %v1410
      %v1414 = vmul.f32 %v1070, %v1410
      %v1415 = vmul.f32 %v1407, %v1410
      %v1416 = vadd.f32 %v1401, %v1412
      %v1417 = vadd.f32 %v1402, %v1413
      %v1418 = vadd.f32 %v1403, %v1414
      %v1419 = vadd.f32 %v1404, %v1415
      %1420 = vset.pattern.permute.xlu0 2
      %1421 = vperm.xlu0 %1420, %v262
      %v1422 = vpop.permute.xlu0 %1421
      %v1425 = vperm.slane %v313, 0
      %v1427 = vmul.f32 %v399, %v1425
      %v1428 = vmul.f32 %v748, %v1425
      %v1429 = vmul.f32 %v1085, %v1425
      %v1430 = vmul.f32 %v1422, %v1425
      %v1431 = vadd.f32 %v1416, %v1427
      %v1432 = vadd.f32 %v1417, %v1428
      %v1433 = vadd.f32 %v1418, %v1429
      %v1434 = vadd.f32 %v1419, %v1430
      %1435 = vset.pattern.permute.xlu0 3
      %1436 = vperm.xlu0 %1435, %v262
      %v1437 = vpop.permute.xlu0 %1436
      %v1440 = vperm.slane %v314, 0
      %v1442 = vmul.f32 %v426, %v1440
      %v1443 = vmul.f32 %v763, %v1440
      %v1444 = vmul.f32 %v1100, %v1440
      %v1445 = vmul.f32 %v1437, %v1440
      %v1446 = vadd.f32 %v1431, %v1442
      %v1447 = vadd.f32 %v1432, %v1443
      %v1448 = vadd.f32 %v1433, %v1444
      %v1449 = vadd.f32 %v1434, %v1445
      %v1451 = vperm.slane %v315, 0
      %v1453 = vmul.f32 %v345, %v1451
      %v1454 = vmul.f32 %v718, %v1451
      %v1455 = vmul.f32 %v1055, %v1451
      %v1456 = vmul.f32 %v1392, %v1451
      %v1461 = vrot.slane %v1453, 1
      %v1462 = vrot.slane %v1454, 1
      %v1463 = vrot.slane %v1455, 1
      %v1464 = vrot.slane %v1456, 1
      %v1469 = vadd.f32 %v1446, %v1461
      %v1470 = vadd.f32 %v1447, %v1462
      %v1471 = vadd.f32 %v1448, %v1463
      %v1472 = vadd.f32 %v1449, %v1464
      %v1474 = vperm.slane %v316, 0
      %v1476 = vmul.f32 %v372, %v1474
      %v1477 = vmul.f32 %v733, %v1474
      %v1478 = vmul.f32 %v1070, %v1474
      %v1479 = vmul.f32 %v1407, %v1474
      %v1484 = vrot.slane %v1476, 1
      %v1485 = vrot.slane %v1477, 1
      %v1486 = vrot.slane %v1478, 1
      %v1487 = vrot.slane %v1479, 1
      %v1492 = vadd.f32 %v1469, %v1484
      %v1493 = vadd.f32 %v1470, %v1485
      %v1494 = vadd.f32 %v1471, %v1486
      %v1495 = vadd.f32 %v1472, %v1487
      %v1497 = vperm.slane %v317, 0
      %v1499 = vmul.f32 %v399, %v1497
      %v1500 = vmul.f32 %v748, %v1497
      %v1501 = vmul.f32 %v1085, %v1497
      %v1502 = vmul.f32 %v1422, %v1497
      %v1507 = vrot.slane %v1499, 1
      %v1508 = vrot.slane %v1500, 1
      %v1509 = vrot.slane %v1501, 1
      %v1510 = vrot.slane %v1502, 1
      %v1515 = vadd.f32 %v1492, %v1507
      %v1516 = vadd.f32 %v1493, %v1508
      %v1517 = vadd.f32 %v1494, %v1509
      %v1518 = vadd.f32 %v1495, %v1510
      %v1520 = vperm.slane %v318, 0
      %v1522 = vmul.f32 %v426, %v1520
      %v1523 = vmul.f32 %v763, %v1520
      %v1524 = vmul.f32 %v1100, %v1520
      %v1525 = vmul.f32 %v1437, %v1520
      %v1530 = vrot.slane %v1522, 1
      %v1531 = vrot.slane %v1523, 1
      %v1532 = vrot.slane %v1524, 1
      %v1533 = vrot.slane %v1525, 1
      %v1538 = vadd.f32 %v1515, %v1530
      %v1539 = vadd.f32 %v1516, %v1531
      %v1540 = vadd.f32 %v1517, %v1532
      %v1541 = vadd.f32 %v1518, %v1533
      %v1543 = vperm.slane %v319, 0
      %v1545 = vmul.f32 %v345, %v1543
      %v1546 = vmul.f32 %v718, %v1543
      %v1547 = vmul.f32 %v1055, %v1543
      %v1548 = vmul.f32 %v1392, %v1543
      %v1553 = vrot.slane %v1545, 2
      %v1554 = vrot.slane %v1546, 2
      %v1555 = vrot.slane %v1547, 2
      %v1556 = vrot.slane %v1548, 2
      %v1561 = vadd.f32 %v1538, %v1553
      %v1562 = vadd.f32 %v1539, %v1554
      %v1563 = vadd.f32 %v1540, %v1555
      %v1564 = vadd.f32 %v1541, %v1556
      %v1566 = vperm.slane %v320, 0
      %v1568 = vmul.f32 %v372, %v1566
      %v1569 = vmul.f32 %v733, %v1566
      %v1570 = vmul.f32 %v1070, %v1566
      %v1571 = vmul.f32 %v1407, %v1566
      %v1576 = vrot.slane %v1568, 2
      %v1577 = vrot.slane %v1569, 2
      %v1578 = vrot.slane %v1570, 2
      %v1579 = vrot.slane %v1571, 2
      %v1584 = vadd.f32 %v1561, %v1576
      %v1585 = vadd.f32 %v1562, %v1577
      %v1586 = vadd.f32 %v1563, %v1578
      %v1587 = vadd.f32 %v1564, %v1579
      %v1589 = vperm.slane %v321, 0
      %v1591 = vmul.f32 %v399, %v1589
      %v1592 = vmul.f32 %v748, %v1589
      %v1593 = vmul.f32 %v1085, %v1589
      %v1594 = vmul.f32 %v1422, %v1589
      %v1599 = vrot.slane %v1591, 2
      %v1600 = vrot.slane %v1592, 2
      %v1601 = vrot.slane %v1593, 2
      %v1602 = vrot.slane %v1594, 2
      %v1607 = vadd.f32 %v1584, %v1599
      %v1608 = vadd.f32 %v1585, %v1600
      %v1609 = vadd.f32 %v1586, %v1601
      %v1610 = vadd.f32 %v1587, %v1602
      %v1612 = vperm.slane %v322, 0
      %v1614 = vmul.f32 %v426, %v1612
      %v1615 = vmul.f32 %v763, %v1612
      %v1616 = vmul.f32 %v1100, %v1612
      %v1617 = vmul.f32 %v1437, %v1612
      %v1622 = vrot.slane %v1614, 2
      %v1623 = vrot.slane %v1615, 2
      %v1624 = vrot.slane %v1616, 2
      %v1625 = vrot.slane %v1617, 2
      %v1630 = vadd.f32 %v1607, %v1622
      %v1631 = vadd.f32 %v1608, %v1623
      %v1632 = vadd.f32 %v1609, %v1624
      %v1633 = vadd.f32 %v1610, %v1625
      %v1635 = vperm.slane %v323, 0
      %v1637 = vmul.f32 %v345, %v1635
      %v1638 = vmul.f32 %v718, %v1635
      %v1639 = vmul.f32 %v1055, %v1635
      %v1640 = vmul.f32 %v1392, %v1635
      %v1645 = vrot.slane %v1637, 3
      %v1646 = vrot.slane %v1638, 3
      %v1647 = vrot.slane %v1639, 3
      %v1648 = vrot.slane %v1640, 3
      %v1653 = vadd.f32 %v1630, %v1645
      %v1654 = vadd.f32 %v1631, %v1646
      %v1655 = vadd.f32 %v1632, %v1647
      %v1656 = vadd.f32 %v1633, %v1648
      %v1658 = vperm.slane %v324, 0
      %v1660 = vmul.f32 %v372, %v1658
      %v1661 = vmul.f32 %v733, %v1658
      %v1662 = vmul.f32 %v1070, %v1658
      %v1663 = vmul.f32 %v1407, %v1658
      %v1668 = vrot.slane %v1660, 3
      %v1669 = vrot.slane %v1661, 3
      %v1670 = vrot.slane %v1662, 3
      %v1671 = vrot.slane %v1663, 3
      %v1676 = vadd.f32 %v1653, %v1668
      %v1677 = vadd.f32 %v1654, %v1669
      %v1678 = vadd.f32 %v1655, %v1670
      %v1679 = vadd.f32 %v1656, %v1671
      %v1681 = vperm.slane %v325, 0
      %v1683 = vmul.f32 %v399, %v1681
      %v1684 = vmul.f32 %v748, %v1681
      %v1685 = vmul.f32 %v1085, %v1681
      %v1686 = vmul.f32 %v1422, %v1681
      %v1691 = vrot.slane %v1683, 3
      %v1692 = vrot.slane %v1684, 3
      %v1693 = vrot.slane %v1685, 3
      %v1694 = vrot.slane %v1686, 3
      %v1699 = vadd.f32 %v1676, %v1691
      %v1700 = vadd.f32 %v1677, %v1692
      %v1701 = vadd.f32 %v1678, %v1693
      %v1702 = vadd.f32 %v1679, %v1694
      %v1704 = vperm.slane %v326, 0
      %v1706 = vmul.f32 %v426, %v1704
      %v1707 = vmul.f32 %v763, %v1704
      %v1708 = vmul.f32 %v1100, %v1704
      %v1709 = vmul.f32 %v1437, %v1704
      %v1714 = vrot.slane %v1706, 3
      %v1715 = vrot.slane %v1707, 3
      %v1716 = vrot.slane %v1708, 3
      %v1717 = vrot.slane %v1709, 3
      %v1722 = vadd.f32 %v1699, %v1714
      %v1723 = vadd.f32 %v1700, %v1715
      %v1724 = vadd.f32 %v1701, %v1716
      %v1725 = vadd.f32 %v1702, %v1717
      %v1726 = vld [vmem:[%s244] sm:$0x1]
      %v1728 = vperm.slane %v1726, 0
      %v1730 = vadd.f32 %v1722, %v1728
      %v1731 = vadd.f32 %v1723, %v1728
      %v1732 = vadd.f32 %v1724, %v1728
      %v1733 = vadd.f32 %v1725, %v1728
      %vm1734 = vcmask 60416
      %1735 = vst.msk [vmem:[%s249] sm:$0xf] %vm1734, %v1730
      %1736 = vst.msk [vmem:[%s249 + $0x4] sm:$0xf] %vm1734, %v1731
      %1737 = vst.msk [vmem:[%s249 + $0x8] sm:$0xf] %vm1734, %v1732
      %1738 = vst.msk [vmem:[%s249 + $0xc] sm:$0xf] %vm1734, %v1733
      %v1739 = vsel %vm1734, %v1730, 0.0
      %v1740 = vsel %vm1734, %v1731, 0.0
      %v1741 = vadd.f32 %v1739, %v1740
      %v1742 = vsel %vm1734, %v1732, 0.0
      %v1743 = vadd.f32 %v1741, %v1742
      %v1744 = vsel %vm1734, %v1733, 0.0
      %v1745 = vadd.f32 %v1743, %v1744
      %v1746 = vsel %vm1734, %v1745, 0.0
      %v1747 = vrot.slane %v1746, 4
      %v1748 = vadd.f32 %v1746, %v1747
      %v1749 = vrot.slane %v1748, 2
      %v1750 = vadd.f32 %v1748, %v1749
      %v1751 = vrot.slane %v1750, 1
      %v1752 = vadd.f32 %v1750, %v1751
      %v1753 = vmul.f32 %v1730, %v1730
      %v1754 = vmul.f32 %v1731, %v1731
      %v1755 = vmul.f32 %v1732, %v1732
      %v1756 = vmul.f32 %v1733, %v1733
      %v1757 = vsel %vm1734, %v1753, 0.0
      %v1758 = vsel %vm1734, %v1754, 0.0
      %v1759 = vadd.f32 %v1757, %v1758
      %v1760 = vsel %vm1734, %v1755, 0.0
      %v1761 = vadd.f32 %v1759, %v1760
      %v1762 = vsel %vm1734, %v1756, 0.0
      %v1763 = vadd.f32 %v1761, %v1762
      %v1764 = vsel %vm1734, %v1763, 0.0
      %v1765 = vrot.slane %v1764, 4
      %v1766 = vadd.f32 %v1764, %v1765
      %v1767 = vrot.slane %v1766, 2
      %v1768 = vadd.f32 %v1766, %v1767
      %v1769 = vrot.slane %v1768, 1
      %v1770 = vadd.f32 %v1768, %v1769
      %vm1771 = vcmask 57344
      %1772 = vst.msk [vmem:[%s252] sm:$0x1] %vm1771, %v1752
      %1773 = vst.msk [vmem:[%s255] sm:$0x1] %vm1771, %v1770
      %p1774 = scmp.lt.s32.totalorder %s17, 1
      %s1775 = scalar_select %p1774, %s17, 1
      %s1776 = smul.addr %s1775, 4
      %s1777 = smul.addr %s1776, 4
      %s1778 = scalar_lea.vmem %s3, %s1777
      %p1779 = scmp.lt.s32.totalorder %s17, 1
      %s1780 = scalar_select %p1779, %s17, 1
      %s1781 = scalar_lea.vmem %s4, %s1780
      %p1782 = scmp.lt.s32.totalorder %s17, 1
      %s1783 = scalar_select %p1782, %s17, 1
      %s1784 = scalar_lea.vmem %s5, %s1783
      // Predicated region
      $region33: #{cond_discriminator_forward.2} parent=31 // pred_check
        %p1785 = pneg %p108
      $region34: #{cond_discriminator_forward.2} parent=31 // pred_check_branch
        %1787 = sbr.rel (%p1785) target = $region36
      $region35: #{cond_discriminator_forward.2} parent=31 // pred_region
        _
      $region36: #{cond_discriminator_forward.2} parent=31 // pred_fallthru
        _
      // Predicated region
      $region37: #{cond_discriminator_forward.2} parent=31 // pred_check
        %p1788 = pneg %p134
      $region38: #{cond_discriminator_forward.2} parent=31 // pred_check_branch
        %1790 = sbr.rel (%p1788) target = $region40
      $region39: #{cond_discriminator_forward.2} parent=31 // pred_region
        _
      $region40: #{cond_discriminator_forward.2} parent=31 // pred_fallthru
        _
      // Predicated region
      $region41: #{cond_discriminator_forward.2} parent=31 // pred_check
        %p1791 = pneg %p160
      $region42: #{cond_discriminator_forward.2} parent=31 // pred_check_branch
        %1793 = sbr.rel (%p1791) target = $region44
      $region43: #{cond_discriminator_forward.2} parent=31 // pred_region
        _
      $region44: #{cond_discriminator_forward.2} parent=31 // pred_fallthru
        _
    $region32: #{cond_discriminator_forward.2} parent=5 // pred_fallthru
      _
    %p1794 = scmp.le.s32.totalorder 2, %s12
    // Predicated region
    $region45: #{cond_discriminator_forward.2} parent=5 // pred_check
      %p1795 = pneg %p1794
    $region46: #{cond_discriminator_forward.2} parent=5 // pred_check_branch
      %1797 = sbr.rel (%p1795) target = $region48
    $region47: #{cond_discriminator_forward.2} parent=5 // pred_region
      %s1798 = ssub.s32 %s12, 2
      // Predicated region
      $region49: #{cond_discriminator_forward.2} parent=47 // pred_check
        %p1799 = pneg %p114
      $region50: #{cond_discriminator_forward.2} parent=47 // pred_check_branch
        %1801 = sbr.rel (%p1799) target = $region52
      $region51: #{cond_discriminator_forward.2} parent=47 // pred_region
        %p1802 = scmp.lt.s32.totalorder %s18, 1
        %s1803 = scalar_select %p1802, %s18, 1
        %s1804 = smul.addr %s1803, 4
        %s1805 = smul.addr %s1804, 4
        %s1806 = scalar_lea.vmem %s3, %s1805
      $region52: #{cond_discriminator_forward.2} parent=47 // pred_fallthru
        _
      // Predicated region
      $region53: #{cond_discriminator_forward.2} parent=47 // pred_check
        %p1807 = pneg %p140
      $region54: #{cond_discriminator_forward.2} parent=47 // pred_check_branch
        %1809 = sbr.rel (%p1807) target = $region56
      $region55: #{cond_discriminator_forward.2} parent=47 // pred_region
        %p1810 = scmp.lt.s32.totalorder %s18, 1
        %s1811 = scalar_select %p1810, %s18, 1
        %s1812 = scalar_lea.vmem %s4, %s1811
      $region56: #{cond_discriminator_forward.2} parent=47 // pred_fallthru
        _
      // Predicated region
      $region57: #{cond_discriminator_forward.2} parent=47 // pred_check
        %p1813 = pneg %p166
      $region58: #{cond_discriminator_forward.2} parent=47 // pred_check_branch
        %1815 = sbr.rel (%p1813) target = $region60
      $region59: #{cond_discriminator_forward.2} parent=47 // pred_region
        %p1816 = scmp.lt.s32.totalorder %s18, 1
        %s1817 = scalar_select %p1816, %s18, 1
        %s1818 = scalar_lea.vmem %s5, %s1817
      $region60: #{cond_discriminator_forward.2} parent=47 // pred_fallthru
        _
    $region48: #{cond_discriminator_forward.2} parent=5 // pred_fallthru
      _
  $region6: #{cond_discriminator_forward.2} parent=0 // loop_footer
    %s16 = sadd.s32 1, %s12
  $region7: #{cond_discriminator_forward.2} parent=0 // loop_footer_branch
    %11 = sbr.rel target = $region3
  $region8: #{cond_discriminator_forward.2} parent=0 // loop_exit
    _

</llo_original>
